<compile_context>
chip_gen: v7x
topology: tpu7x:2x2x1
jax: 0.10.0
libtpu: 0.0.40
codegen_flags: <defaults>
</compile_context>

<pallas_src>
import functools

import jax
import jax.numpy as jnp
from jax.experimental import pallas as pl
from jax.experimental.pallas import tpu as pltpu

_MiB = 1 << 20


# ------------------------- in-kernel helpers (traced) -------------------------

def _layernorm(x, gamma, beta, eps=1e-5):
    mu = jnp.mean(x, axis=-1, keepdims=True)
    var = jnp.mean((x - mu) ** 2, axis=-1, keepdims=True)
    return (x - mu) * jax.lax.rsqrt(var + eps) * gamma + beta


# --------------------------------- kernel ------------------------------------

def emotion_head_kernel(
    x_ref,                                        # (tb, tt, H) features tile (bf16)
    wc1_ref, bc1_ref, lnc1_g_ref, lnc1_b_ref,     # Linear H->512 + LN(512)
    wc2_ref, bc2_ref, lnc2_g_ref, lnc2_b_ref,     # Linear 512->256 + LN(256)
    wc3_ref, bc3_ref,                             # Linear 256->E
    o_ref,                                        # (tb, E) logits
    acc_ref,                                      # (tb, H) f32 running-sum scratch
    *, inv_t,
):
    t = pl.program_id(1)

    # ---- init accumulator at the first time tile ----
    @pl.when(t == 0)
    def _():
        acc_ref[...] = jnp.zeros_like(acc_ref)

    # ---- mean pooling over time: accumulate partial sums tile-by-tile ----
    # Zero-padded frames (time padding done in the wrapper) contribute nothing.
    x = x_ref[...].astype(jnp.float32)            # (tb, tt, H)
    acc_ref[...] += jnp.sum(x, axis=1)            # (tb, H)

    # ---- at the last time tile: finish the mean + run the classifier MLP ----
    @pl.when(t == pl.num_programs(1) - 1)
    def _():
        pooled = acc_ref[...] * inv_t             # (tb, H)  mean over ORIGINAL T

        # Linear(H,512) -> ReLU -> LayerNorm(512)   (Dropout = identity)
        h1 = jnp.dot(pooled, wc1_ref[...], preferred_element_type=jnp.float32) + bc1_ref[...]
        h1 = jnp.maximum(h1, 0.0)
        h1 = _layernorm(h1, lnc1_g_ref[...], lnc1_b_ref[...])

        # Linear(512,256) -> ReLU -> LayerNorm(256) (Dropout = identity)
        h2 = jnp.dot(h1, wc2_ref[...], preferred_element_type=jnp.float32) + bc2_ref[...]
        h2 = jnp.maximum(h2, 0.0)
        h2 = _layernorm(h2, lnc2_g_ref[...], lnc2_b_ref[...])

        # Linear(256, num_emotions)
        logits = jnp.dot(h2, wc3_ref[...], preferred_element_type=jnp.float32) + bc3_ref[...]
        o_ref[...] = logits.astype(o_ref.dtype)


# ------------------------------ host wrapper ----------------------------------

_WEIGHT_NAMES = ("wc1", "bc1", "lnc1_g", "lnc1_b",
                 "wc2", "bc2", "lnc2_g", "lnc2_b",
                 "wc3", "bc3")


def _round_up(x, m):
    return ((x + m - 1) // m) * m


def wavlm_emotion_classifier_v2(features, params, *, time_block=None,
                                batch_block=None, stream_dtype=jnp.bfloat16):
    """features: (B, T, H) encoder last_hidden_state.
    params: dict of pre-transposed weights (every linear is x @ W + b)."""
    B, T, H = features.shape
    E = params["wc3"].shape[1]
    weights = [params[name] for name in _WEIGHT_NAMES]
    weight_bytes = sum(int(w.size) * w.dtype.itemsize for w in weights)

    # Stream the big (B, T, H) tensor in bf16 (halves HBM bytes accessed); the
    # kernel upcasts to f32 before accumulating, so pooling precision is kept.
    feats = features.astype(stream_dtype)
    itm = feats.dtype.itemsize

    # ---------- generation-aware VMEM budget ----------
    try:
        vmem_cap = int(pltpu.get_tpu_info().vmem_capacity_bytes)
    except Exception:                              # pragma: no cover - fallback
        vmem_cap = 64 * _MiB                       # conservative (v7x per-TC)
    vmem_budget = (vmem_cap * 3) // 4              # headroom for Mosaic internals

    # ---------- batch tile ----------
    # Multiple of 8 when possible, up to 32 rows, but keep >= 2 grid steps on
    # the "parallel" batch axis so both v7x TensorCores stream.
    if batch_block is not None and B % batch_block == 0:
        tb = batch_block
    elif B % 8 == 0:
        tb = 8
        for cand in (32, 24, 16, 8):
            if B % cand == 0 and B // cand >= 2:
                tb = cand
                break
    else:
        tb = B

    # ---------- time tile ----------
    # Target ~8 MiB feature tiles on 64 MiB-VMEM parts (v7x), ~16 MiB on
    # 128 MiB parts (v5e/v6e); multiple of 16 for bf16 sublane packing.
    frame_bytes = max(1, tb * H * itm)
    target_tile = 8 * _MiB if vmem_cap <= 64 * _MiB else 16 * _MiB
    if time_block is not None:
        tt = _round_up(int(time_block), 16)
    else:
        tt = max(16, ((target_tile // frame_bytes) // 16) * 16)
    tt = min(tt, _round_up(T, 16))

    def working_set(tt_):
        return (2 * tb * tt_ * H * itm            # double-buffered feature tiles
                + 2 * weight_bytes                # resident weights (worst case)
                + 2 * tb * E * 4                  # output tile
                + tb * H * 4)                     # f32 accumulator scratch

    while working_set(tt) > vmem_budget and tt > 16:
        tt = max(16, ((tt // 2) // 16) * 16)

    # ---------- zero-pad the time axis to a multiple of the time tile ----------
    T_pad = _round_up(T, tt)
    if T_pad != T:
        feats = jnp.pad(feats, ((0, 0), (0, T_pad - T), (0, 0)))
    inv_t = 1.0 / float(T)                        # mean over the ORIGINAL length

    grid = (B // tb, T_pad // tt)

    x_spec = pl.BlockSpec((tb, tt, H), lambda b, t: (b, t, 0))
    # Weights: whole-array VMEM residents -> fetched once, single-buffered.
    w_specs = [pl.BlockSpec(memory_space=pltpu.MemorySpace.VMEM) for _ in weights]
    out_spec = pl.BlockSpec((tb, E), lambda b, t: (b, 0))

    working = working_set(tt)
    vmem_limit = int(min(max(working + 4 * _MiB, 8 * _MiB), vmem_budget))
    vmem_limit = max(vmem_limit, working + _MiB)  # never clamp below the working set
    vmem_limit = min(vmem_limit, vmem_cap)

    flops = 2 * B * (H * 512 + 512 * 256 + 256 * E) + B * T_pad * H
    bytes_accessed = int(B * T_pad * H * itm + weight_bytes + B * E * 4)
    cost = pl.CostEstimate(flops=flops, transcendentals=2 * B,
                           bytes_accessed=bytes_accessed)

    kernel = functools.partial(emotion_head_kernel, inv_t=inv_t)

    logits = pl.pallas_call(
        kernel,
        out_shape=jax.ShapeDtypeStruct((B, E), jnp.float32),
        grid_spec=pltpu.PrefetchScalarGridSpec(
            num_scalar_prefetch=0,
            grid=grid,
            in_specs=[x_spec] + w_specs,
            out_specs=out_spec,
            scratch_shapes=[pltpu.VMEM((tb, H), jnp.float32)],
        ),
        compiler_params=pltpu.CompilerParams(
            dimension_semantics=("parallel", "arbitrary"),  # batch parallel, time reduction
            vmem_limit_bytes=vmem_limit,
        ),
        cost_estimate=cost,
    )(feats, *weights)

    return {"emo": logits}


# --------------------------- pure-JAX reference --------------------------------

def reference_head(x, p):
    pooled = x.mean(axis=1)                       # mean pooling over time

    def lin(v, w, b):
        return v @ w + b

    def ln(v, g, b, eps=1e-5):
        mu = v.mean(-1, keepdims=True)
        var = ((v - mu) ** 2).mean(-1, keepdims=True)
        return (v - mu) / jnp.sqrt(var + eps) * g + b

    h1 = ln(jnp.maximum(lin(pooled, p["wc1"], p["bc1"]), 0.0), p["lnc1_g"], p["lnc1_b"])
    h2 = ln(jnp.maximum(lin(h1, p["wc2"], p["bc2"]), 0.0), p["lnc2_g"], p["lnc2_b"])
    return lin(h2, p["wc3"], p["bc3"])


# ----------------------------------- main --------------------------------------

def make_params(key, H, E):
    ks = jax.random.split(key, 6)
    r = lambda k, shape, scale=0.08: (scale * jax.random.normal(k, shape)).astype(jnp.float32)
    return {
        "wc1": r(ks[0], (H, 512)), "bc1": r(ks[1], (1, 512)),
        "lnc1_g": jnp.ones((1, 512), jnp.float32), "lnc1_b": jnp.zeros((1, 512), jnp.float32),
        "wc2": r(ks[2], (512, 256)), "bc2": r(ks[3], (1, 256)),
        "lnc2_g": jnp.ones((1, 256), jnp.float32), "lnc2_b": jnp.zeros((1, 256), jnp.float32),
        "wc3": r(ks[4], (256, E)), "bc3": r(ks[5], (1, E)),
    }


if __name__ == "__main__":
    # Small stand-in shapes for WavLM: B=16, T=40 frames (deliberately NOT a
    # multiple of the time tile, exercising the zero-padding path), hidden
    # H=32, 7 emotions.
    B, T, H, E = 16, 40, 32, 7
    key = jax.random.PRNGKey(0)
    k_x, k_p = jax.random.split(key)
    features = jax.random.normal(k_x, (B, T, H), dtype=jnp.float32)
    params = make_params(k_p, H, E)

    # time_block=16 -> 3 time tiles (40 padded to 48), exercising the streamed
    # init / accumulate / finalize path; the batch axis gets 2 parallel steps.
    out = wavlm_emotion_classifier_v2(features, params, time_block=16)
    logits = jax.block_until_ready(out["emo"])

    # Reference computed on the same bf16-quantized stream the kernel consumes.
    feats_q = features.astype(jnp.bfloat16).astype(jnp.float32)
    ref = reference_head(feats_q, params)

    assert logits.shape == (B, E), logits.shape
    assert bool(jnp.all(jnp.isfinite(logits)))
    assert bool(jnp.allclose(logits, ref, atol=2e-3, rtol=2e-3)), (logits, ref)

    print("KERNEL_OK")
</pallas_src>

<mosaic_0001>
module attributes {stable_mosaic.version = 11 : i64} {
  func.func @emotion_head_kernel(%arg0: i32, %arg1: i32, %arg2: memref<8x16x32xbf16, #tpu.memory_space<vmem>>, %arg3: memref<32x512xf32, #tpu.memory_space<vmem>>, %arg4: memref<1x512xf32, #tpu.memory_space<vmem>>, %arg5: memref<1x512xf32, #tpu.memory_space<vmem>>, %arg6: memref<1x512xf32, #tpu.memory_space<vmem>>, %arg7: memref<512x256xf32, #tpu.memory_space<vmem>>, %arg8: memref<1x256xf32, #tpu.memory_space<vmem>>, %arg9: memref<1x256xf32, #tpu.memory_space<vmem>>, %arg10: memref<1x256xf32, #tpu.memory_space<vmem>>, %arg11: memref<256x7xf32, #tpu.memory_space<vmem>>, %arg12: memref<1x7xf32, #tpu.memory_space<vmem>>, %arg13: memref<8x7xf32, #tpu.memory_space<vmem>>, %arg14: memref<8x32xf32, #tpu.memory_space<vmem>>) attributes {dimension_semantics = [#tpu.dimension_semantics<parallel>, #tpu.dimension_semantics<arbitrary>], iteration_bounds = array<i64: 2, 3>, scalar_prefetch = 0 : i64, scratch_operands = 1 : i64, tpu.core_type = #tpu.core_type<tc>, window_params = [{transform_indices = @transform_0, window_bounds = array<i64: 8, 16, 32>}, {pipeline_mode = #tpu.pipeline_mode<synchronous>, transform_indices = @transform_1, window_bounds = array<i64: 32, 512>}, {pipeline_mode = #tpu.pipeline_mode<synchronous>, transform_indices = @transform_2, window_bounds = array<i64: 1, 512>}, {pipeline_mode = #tpu.pipeline_mode<synchronous>, transform_indices = @transform_3, window_bounds = array<i64: 1, 512>}, {pipeline_mode = #tpu.pipeline_mode<synchronous>, transform_indices = @transform_4, window_bounds = array<i64: 1, 512>}, {pipeline_mode = #tpu.pipeline_mode<synchronous>, transform_indices = @transform_5, window_bounds = array<i64: 512, 256>}, {pipeline_mode = #tpu.pipeline_mode<synchronous>, transform_indices = @transform_6, window_bounds = array<i64: 1, 256>}, {pipeline_mode = #tpu.pipeline_mode<synchronous>, transform_indices = @transform_7, window_bounds = array<i64: 1, 256>}, {pipeline_mode = #tpu.pipeline_mode<synchronous>, transform_indices = @transform_8, window_bounds = array<i64: 1, 256>}, {pipeline_mode = #tpu.pipeline_mode<synchronous>, transform_indices = @transform_9, window_bounds = array<i64: 256, 7>}, {pipeline_mode = #tpu.pipeline_mode<synchronous>, transform_indices = @transform_10, window_bounds = array<i64: 1, 7>}, {transform_indices = @transform_11, window_bounds = array<i64: 8, 7>}]} {
    %c0_i32 = arith.constant 0 : i32
    %0 = arith.cmpi eq, %arg1, %c0_i32 : i32
    %1 = arith.extui %0 : i1 to i32
    %c0_i32_0 = arith.constant 0 : i32
    %2 = arith.cmpi ne, %1, %c0_i32_0 : i32
    scf.if %2 {
      %cst_8 = arith.constant 0.000000e+00 : f32
      %12 = vector.broadcast %cst_8 : f32 to vector<8x32xf32>
      %c0_9 = arith.constant 0 : index
      %c0_10 = arith.constant 0 : index
      %13 = vector.load %arg14[%c0_9, %c0_10] : memref<8x32xf32, #tpu.memory_space<vmem>>, vector<8x32xf32>
      tpu.vector_store %arg14[%c0_9, %c0_10], %12 {strides = array<i32>} : memref<8x32xf32, #tpu.memory_space<vmem>>, vector<8x32xf32>,
    } else {
    }
    %c0 = arith.constant 0 : index
    %c0_1 = arith.constant 0 : index
    %c0_2 = arith.constant 0 : index
    %3 = vector.load %arg2[%c0, %c0_1, %c0_2] : memref<8x16x32xbf16, #tpu.memory_space<vmem>>, vector<8x16x32xbf16>
    %4 = arith.extf %3 : vector<8x16x32xbf16> to vector<8x16x32xf32>
    %c0_3 = arith.constant 0 : index
    %c0_4 = arith.constant 0 : index
    %5 = vector.load %arg14[%c0_3, %c0_4] : memref<8x32xf32, #tpu.memory_space<vmem>>, vector<8x32xf32>
    %cst = arith.constant dense<0.000000e+00> : vector<8x32xf32>
    %6 = vector.multi_reduction <add>, %4, %cst [1] : vector<8x16x32xf32> to vector<8x32xf32>
    %7 = arith.addf %5, %6 : vector<8x32xf32>
    %c0_5 = arith.constant 0 : index
    %c0_6 = arith.constant 0 : index
    %8 = vector.load %arg14[%c0_5, %c0_6] : memref<8x32xf32, #tpu.memory_space<vmem>>, vector<8x32xf32>
    tpu.vector_store %arg14[%c0_5, %c0_6], %7 {strides = array<i32>} : memref<8x32xf32, #tpu.memory_space<vmem>>, vector<8x32xf32>,
    %c2_i32 = arith.constant 2 : i32
    %9 = arith.cmpi eq, %arg1, %c2_i32 : i32
    %10 = arith.extui %9 : i1 to i32
    %c0_i32_7 = arith.constant 0 : i32
    %11 = arith.cmpi ne, %10, %c0_i32_7 : i32
    scf.if %11 {
      %c0_8 = arith.constant 0 : index
      %c0_9 = arith.constant 0 : index
      %12 = vector.load %arg14[%c0_8, %c0_9] : memref<8x32xf32, #tpu.memory_space<vmem>>, vector<8x32xf32>
      %cst_10 = arith.constant 2.500000e-02 : f32
      %13 = vector.broadcast %cst_10 : f32 to vector<8x32xf32>
      %14 = arith.mulf %12, %13 : vector<8x32xf32>
      %c0_11 = arith.constant 0 : index
      %c0_12 = arith.constant 0 : index
      %15 = vector.load %arg3[%c0_11, %c0_12] : memref<32x512xf32, #tpu.memory_space<vmem>>, vector<32x512xf32>
      %cst_13 = arith.constant dense<0.000000e+00> : vector<8x512xf32>
      %16 = tpu.matmul %14, %15, %cst_13 {dimension_numbers = #tpu.dot_dimension_numbers<[1], [0], [0], [1], [0, 0, 1, 1], [], []>} : vector<8x32xf32>, vector<32x512xf32>, vector<8x512xf32> -> vector<8x512xf32>
      %c0_14 = arith.constant 0 : index
      %c0_15 = arith.constant 0 : index
      %17 = vector.load %arg4[%c0_14, %c0_15] : memref<1x512xf32, #tpu.memory_space<vmem>>, vector<1x512xf32>
      %18 = vector.broadcast %17 : vector<1x512xf32> to vector<8x512xf32>
      %19 = arith.addf %16, %18 : vector<8x512xf32>
      %cst_16 = arith.constant 0.000000e+00 : f32
      %20 = vector.broadcast %cst_16 : f32 to vector<8x512xf32>
      %21 = arith.maximumf %19, %20 : vector<8x512xf32>
      %c0_17 = arith.constant 0 : index
      %c0_18 = arith.constant 0 : index
      %22 = vector.load %arg5[%c0_17, %c0_18] : memref<1x512xf32, #tpu.memory_space<vmem>>, vector<1x512xf32>
      %c0_19 = arith.constant 0 : index
      %c0_20 = arith.constant 0 : index
      %23 = vector.load %arg6[%c0_19, %c0_20] : memref<1x512xf32, #tpu.memory_space<vmem>>, vector<1x512xf32>
      %cst_21 = arith.constant dense<0.000000e+00> : vector<8xf32>
      %24 = vector.multi_reduction <add>, %21, %cst_21 [1] : vector<8x512xf32> to vector<8xf32>
      %25 = vector.shape_cast %24 : vector<8xf32> to vector<8x1xf32>
      %cst_22 = arith.constant 5.120000e+02 : f32
      %26 = vector.broadcast %cst_22 : f32 to vector<8x1xf32>
      %27 = arith.divf %25, %26 : vector<8x1xf32>
      %28 = vector.broadcast %27 : vector<8x1xf32> to vector<8x512xf32>
      %29 = arith.subf %21, %28 : vector<8x512xf32>
      %30 = arith.mulf %29, %29 : vector<8x512xf32>
      %cst_23 = arith.constant dense<0.000000e+00> : vector<8xf32>
      %31 = vector.multi_reduction <add>, %30, %cst_23 [1] : vector<8x512xf32> to vector<8xf32>
      %32 = vector.shape_cast %31 : vector<8xf32> to vector<8x1xf32>
      %cst_24 = arith.constant 5.120000e+02 : f32
      %33 = vector.broadcast %cst_24 : f32 to vector<8x1xf32>
      %34 = arith.divf %32, %33 : vector<8x1xf32>
      %35 = vector.broadcast %27 : vector<8x1xf32> to vector<8x512xf32>
      %36 = arith.subf %21, %35 : vector<8x512xf32>
      %cst_25 = arith.constant 9.99999974E-6 : f32
      %37 = vector.broadcast %cst_25 : f32 to vector<8x1xf32>
      %38 = arith.addf %34, %37 : vector<8x1xf32>
      %39 = math.rsqrt %38 : vector<8x1xf32>
      %40 = vector.broadcast %39 : vector<8x1xf32> to vector<8x512xf32>
      %41 = arith.mulf %36, %40 : vector<8x512xf32>
      %42 = vector.broadcast %22 : vector<1x512xf32> to vector<8x512xf32>
      %43 = arith.mulf %41, %42 : vector<8x512xf32>
      %44 = vector.broadcast %23 : vector<1x512xf32> to vector<8x512xf32>
      %45 = arith.addf %43, %44 : vector<8x512xf32>
      %c0_26 = arith.constant 0 : index
      %c0_27 = arith.constant 0 : index
      %46 = vector.load %arg7[%c0_26, %c0_27] : memref<512x256xf32, #tpu.memory_space<vmem>>, vector<512x256xf32>
      %cst_28 = arith.constant dense<0.000000e+00> : vector<8x256xf32>
      %47 = tpu.matmul %45, %46, %cst_28 {dimension_numbers = #tpu.dot_dimension_numbers<[1], [0], [0], [1], [0, 0, 1, 1], [], []>} : vector<8x512xf32>, vector<512x256xf32>, vector<8x256xf32> -> vector<8x256xf32>
      %c0_29 = arith.constant 0 : index
      %c0_30 = arith.constant 0 : index
      %48 = vector.load %arg8[%c0_29, %c0_30] : memref<1x256xf32, #tpu.memory_space<vmem>>, vector<1x256xf32>
      %49 = vector.broadcast %48 : vector<1x256xf32> to vector<8x256xf32>
      %50 = arith.addf %47, %49 : vector<8x256xf32>
      %cst_31 = arith.constant 0.000000e+00 : f32
      %51 = vector.broadcast %cst_31 : f32 to vector<8x256xf32>
      %52 = arith.maximumf %50, %51 : vector<8x256xf32>
      %c0_32 = arith.constant 0 : index
      %c0_33 = arith.constant 0 : index
      %53 = vector.load %arg9[%c0_32, %c0_33] : memref<1x256xf32, #tpu.memory_space<vmem>>, vector<1x256xf32>
      %c0_34 = arith.constant 0 : index
      %c0_35 = arith.constant 0 : index
      %54 = vector.load %arg10[%c0_34, %c0_35] : memref<1x256xf32, #tpu.memory_space<vmem>>, vector<1x256xf32>
      %cst_36 = arith.constant dense<0.000000e+00> : vector<8xf32>
      %55 = vector.multi_reduction <add>, %52, %cst_36 [1] : vector<8x256xf32> to vector<8xf32>
      %56 = vector.shape_cast %55 : vector<8xf32> to vector<8x1xf32>
      %cst_37 = arith.constant 2.560000e+02 : f32
      %57 = vector.broadcast %cst_37 : f32 to vector<8x1xf32>
      %58 = arith.divf %56, %57 : vector<8x1xf32>
      %59 = vector.broadcast %58 : vector<8x1xf32> to vector<8x256xf32>
      %60 = arith.subf %52, %59 : vector<8x256xf32>
      %61 = arith.mulf %60, %60 : vector<8x256xf32>
      %cst_38 = arith.constant dense<0.000000e+00> : vector<8xf32>
      %62 = vector.multi_reduction <add>, %61, %cst_38 [1] : vector<8x256xf32> to vector<8xf32>
      %63 = vector.shape_cast %62 : vector<8xf32> to vector<8x1xf32>
      %cst_39 = arith.constant 2.560000e+02 : f32
      %64 = vector.broadcast %cst_39 : f32 to vector<8x1xf32>
      %65 = arith.divf %63, %64 : vector<8x1xf32>
      %66 = vector.broadcast %58 : vector<8x1xf32> to vector<8x256xf32>
      %67 = arith.subf %52, %66 : vector<8x256xf32>
      %cst_40 = arith.constant 9.99999974E-6 : f32
      %68 = vector.broadcast %cst_40 : f32 to vector<8x1xf32>
      %69 = arith.addf %65, %68 : vector<8x1xf32>
      %70 = math.rsqrt %69 : vector<8x1xf32>
      %71 = vector.broadcast %70 : vector<8x1xf32> to vector<8x256xf32>
      %72 = arith.mulf %67, %71 : vector<8x256xf32>
      %73 = vector.broadcast %53 : vector<1x256xf32> to vector<8x256xf32>
      %74 = arith.mulf %72, %73 : vector<8x256xf32>
      %75 = vector.broadcast %54 : vector<1x256xf32> to vector<8x256xf32>
      %76 = arith.addf %74, %75 : vector<8x256xf32>
      %c0_41 = arith.constant 0 : index
      %c0_42 = arith.constant 0 : index
      %77 = vector.load %arg11[%c0_41, %c0_42] : memref<256x7xf32, #tpu.memory_space<vmem>>, vector<256x7xf32>
      %cst_43 = arith.constant dense<0.000000e+00> : vector<8x7xf32>
      %78 = tpu.matmul %76, %77, %cst_43 {dimension_numbers = #tpu.dot_dimension_numbers<[1], [0], [0], [1], [0, 0, 1, 1], [], []>} : vector<8x256xf32>, vector<256x7xf32>, vector<8x7xf32> -> vector<8x7xf32>
      %c0_44 = arith.constant 0 : index
      %c0_45 = arith.constant 0 : index
      %79 = vector.load %arg12[%c0_44, %c0_45] : memref<1x7xf32, #tpu.memory_space<vmem>>, vector<1x7xf32>
      %80 = vector.broadcast %79 : vector<1x7xf32> to vector<8x7xf32>
      %81 = arith.addf %78, %80 : vector<8x7xf32>
      %c0_46 = arith.constant 0 : index
      %c0_47 = arith.constant 0 : index
      %82 = vector.load %arg13[%c0_46, %c0_47] : memref<8x7xf32, #tpu.memory_space<vmem>>, vector<8x7xf32>
      tpu.vector_store %arg13[%c0_46, %c0_47], %81 {strides = array<i32>} : memref<8x7xf32, #tpu.memory_space<vmem>>, vector<8x7xf32>,
    } else {
    }
    return
  }
  func.func @transform_0(%arg0: i32, %arg1: i32) -> (i32, i32, i32) {
    %c0_i32 = arith.constant 0 : i32
    %c0_i32_0 = arith.constant 0 : i32
    return %arg0, %arg1, %c0_i32 : i32, i32, i32
  }
  func.func @transform_1(%arg0: i32, %arg1: i32) -> (i32, i32) {
    %c0_i32 = arith.constant 0 : i32
    %c0_i32_0 = arith.constant 0 : i32
    %c0_i32_1 = arith.constant 0 : i32
    return %c0_i32, %c0_i32_0 : i32, i32
  }
  func.func @transform_2(%arg0: i32, %arg1: i32) -> (i32, i32) {
    %c0_i32 = arith.constant 0 : i32
    %c0_i32_0 = arith.constant 0 : i32
    %c0_i32_1 = arith.constant 0 : i32
    return %c0_i32, %c0_i32_0 : i32, i32
  }
  func.func @transform_3(%arg0: i32, %arg1: i32) -> (i32, i32) {
    %c0_i32 = arith.constant 0 : i32
    %c0_i32_0 = arith.constant 0 : i32
    %c0_i32_1 = arith.constant 0 : i32
    return %c0_i32, %c0_i32_0 : i32, i32
  }
  func.func @transform_4(%arg0: i32, %arg1: i32) -> (i32, i32) {
    %c0_i32 = arith.constant 0 : i32
    %c0_i32_0 = arith.constant 0 : i32
    %c0_i32_1 = arith.constant 0 : i32
    return %c0_i32, %c0_i32_0 : i32, i32
  }
  func.func @transform_5(%arg0: i32, %arg1: i32) -> (i32, i32) {
    %c0_i32 = arith.constant 0 : i32
    %c0_i32_0 = arith.constant 0 : i32
    %c0_i32_1 = arith.constant 0 : i32
    return %c0_i32, %c0_i32_0 : i32, i32
  }
  func.func @transform_6(%arg0: i32, %arg1: i32) -> (i32, i32) {
    %c0_i32 = arith.constant 0 : i32
    %c0_i32_0 = arith.constant 0 : i32
    %c0_i32_1 = arith.constant 0 : i32
    return %c0_i32, %c0_i32_0 : i32, i32
  }
  func.func @transform_7(%arg0: i32, %arg1: i32) -> (i32, i32) {
    %c0_i32 = arith.constant 0 : i32
    %c0_i32_0 = arith.constant 0 : i32
    %c0_i32_1 = arith.constant 0 : i32
    return %c0_i32, %c0_i32_0 : i32, i32
  }
  func.func @transform_8(%arg0: i32, %arg1: i32) -> (i32, i32) {
    %c0_i32 = arith.constant 0 : i32
    %c0_i32_0 = arith.constant 0 : i32
    %c0_i32_1 = arith.constant 0 : i32
    return %c0_i32, %c0_i32_0 : i32, i32
  }
  func.func @transform_9(%arg0: i32, %arg1: i32) -> (i32, i32) {
    %c0_i32 = arith.constant 0 : i32
    %c0_i32_0 = arith.constant 0 : i32
    %c0_i32_1 = arith.constant 0 : i32
    return %c0_i32, %c0_i32_0 : i32, i32
  }
  func.func @transform_10(%arg0: i32, %arg1: i32) -> (i32, i32) {
    %c0_i32 = arith.constant 0 : i32
    %c0_i32_0 = arith.constant 0 : i32
    %c0_i32_1 = arith.constant 0 : i32
    return %c0_i32, %c0_i32_0 : i32, i32
  }
  func.func @transform_11(%arg0: i32, %arg1: i32) -> (i32, i32) {
    %c0_i32 = arith.constant 0 : i32
    %c0_i32_0 = arith.constant 0 : i32
    return %arg0, %c0_i32 : i32, i32
  }
}

</mosaic_0001>

<llo_original>
// kernel: tpu_custom_call.1
$region0: #{tpu_custom_call.1}
  #allocation0 [shape = 'u32[]', space=smem, size = 0x4, offset = 0x4, fixed_abs, tag = 'smem constant byte address 0x4 - core index']
  #allocation1 [shape = 'u32[144,128]{1,0:T(1,128)}', space=vmem, size = 0x12000, scoped, tag = 'internal scratch']
  #allocation2 [shape = 'f32[8,32]{1,0:T(8,128)}', space=vmem, size = 0x1000, scoped, tag = 'scratch operand']
  %s0 = inlined_call_operand.vmem [shape: bf16[16,48,32], index: 0, kind: input, shape index: {}]
  %s1 = inlined_call_operand.vmem [shape: f32[32,512], index: 1, kind: input, shape index: {}]
  %s2 = inlined_call_operand.vmem [shape: f32[1,512], index: 2, kind: input, shape index: {}]
  %s3 = inlined_call_operand.vmem [shape: f32[1,512], index: 3, kind: input, shape index: {}]
  %s4 = inlined_call_operand.vmem [shape: f32[1,512], index: 4, kind: input, shape index: {}]
  %s5 = inlined_call_operand.hbm [shape: f32[512,256], index: 5, kind: input, shape index: {}]
  %s6 = inlined_call_operand.vmem [shape: f32[1,256], index: 6, kind: input, shape index: {}]
  %s7 = inlined_call_operand.vmem [shape: f32[1,256], index: 7, kind: input, shape index: {}]
  %s8 = inlined_call_operand.vmem [shape: f32[1,256], index: 8, kind: input, shape index: {}]
  %s9 = inlined_call_operand.vmem [shape: f32[256,7], index: 9, kind: input, shape index: {}]
  %s10 = inlined_call_operand.vmem [shape: f32[1,7], index: 10, kind: input, shape index: {}]
  %s11 = inlined_call_operand.vmem [shape: f32[16,7], index: 11, kind: output, shape index: {}]
  %s12 = sld [smem:[#allocation0]]
  $region130: #{tpu_custom_call.1} parent=0
    _
  %s14 = ssub.s32 1, %s12
  %s15 = scalar_select 0, %s14, %s12
  $region1: #{tpu_custom_call.1} parent=0
    #allocation3 [shape = 'u8[65536]{0}', space=vmem, size = 0x10000, scoped, tag = 'input window, operand 0']
    #allocation4 [shape = 'u8[524288]{0}', space=vmem, size = 0x80000, scoped, tag = 'input window, operand 5, single buffered']
    #allocation5 [shape = 's32[2]{0}', space=sflag, size = 0x8, scoped, tag = 'scoped memory for tpu_custom_call.1']
    %16 = vsyncpa [#allocation5], 0
    loop: start=0, step=1, limit=8
    $region2: #{tpu_custom_call.1} parent=1 // loop_pre_header
      _
    $region3: #{tpu_custom_call.1} parent=1 // loop_header
      %s18 = sphi 0, %s22
      %p19 = scmp.ge.s32.totalorder %s18, 8
      %s25 = sphi 0, %s37
      %s26 = sphi 0, %s33
      %s27 = sphi 0, %s25
      %s28 = sphi 0, %s26
      %s29 = sphi 0, %s27
      %s30 = sphi 0, %s28
      %s42 = sphi 0, %s44
      %s45 = sphi 0, %s42
      %s46 = sphi 0, %s45
      %s62 = sphi 0, %s46
      %s66 = sphi 0, %s66
      %s68 = sphi 0, %s66
      %s69 = sphi 0, %s68
      %s83 = sphi 0, %s69
      %s87 = sphi 0, %s87
      %s89 = sphi 0, %s87
      %s90 = sphi 0, %s89
      %s104 = sphi 0, %s90
      %s108 = sphi 0, %s108
      %s110 = sphi 0, %s108
      %s111 = sphi 0, %s110
      %s125 = sphi 0, %s111
      %s129 = sphi 0, %s129
      %s131 = sphi 0, %s129
      %s132 = sphi 0, %s131
      %s146 = sphi 0, %s132
      %s150 = sphi 0, %s150
      %s152 = sphi 0, %s150
      %s153 = sphi 0, %s152
      %s167 = sphi 0, %s153
      %s171 = sphi 0, %s171
      %s173 = sphi 0, %s171
      %s174 = sphi 0, %s173
      %s188 = sphi 0, %s174
      %s192 = sphi 0, %s192
      %s194 = sphi 0, %s192
      %s195 = sphi 0, %s194
      %s209 = sphi 0, %s195
      %s213 = sphi 0, %s213
      %s215 = sphi 0, %s213
      %s216 = sphi 0, %s215
      %s230 = sphi 0, %s216
      %s234 = sphi 0, %s234
      %s236 = sphi 0, %s234
      %s237 = sphi 0, %s236
      %s251 = sphi 0, %s237
      %s255 = sphi 0, %s255
      %s257 = sphi 0, %s255
      %s258 = sphi 0, %s257
      %s272 = sphi 0, %s258
      %s278 = sphi 0, %s280
      %s281 = sphi 0, %s278
      %s282 = sphi 0, %s281
      %s298 = sphi 0, %s282
    $region4: #{tpu_custom_call.1} parent=1 // loop_header_branch
      %21 = sbr.rel (%p19) target = $region8
    $region5: #{tpu_custom_call.1} parent=1 // loop_body
      %s23 = ssub.s32 %s18, 1
      %s24 = ssub.s32 %s18, 2
      %s31 = sadd.s32 1, %s26
      %p32 = scmp.ge.s32.totalorder %s31, 3
      %s33 = scalar_select %p32, 0, %s31
      %s34 = sadd.s32 1, %s25
      %s35 = scalar_select %p32, %s34, %s25
      %p36 = scmp.ge.s32.totalorder %s35, 2
      %s37 = scalar_select %p36, 0, %s35
      %s38 = ssub.s32 %s25, %s37
      %s39 = ssub.s32 %s26, %s33
      %s40 = sor.u32 %s38, %s39
      %p41 = scmp.eq.s32.totalorder %s40, 0
      %s43 = sadd.s32 %s42, 1
      %s44 = scalar_select %p41, %s42, %s43
      %p47 = pneg %p41
      %p48 = scmp.eq.s32.totalorder %s18, 5
      %p49 = por %p47, %p48
      %p50 = scmp.ne.s32.totalorder %s42, %s45
      %p51 = scmp.eq.s32.totalorder %s18, 0
      %p52 = por %p50, %p51
      %p53 = scmp.ne.s32.totalorder %s42, %s45
      %p54 = scmp.eq.s32.totalorder %s23, 5
      %p55 = por %p53, %p54
      %p56 = scmp.ne.s32.totalorder %s45, %s46
      %p57 = scmp.eq.s32.totalorder %s23, 0
      %p58 = por %p56, %p57
      %p59 = scmp.ne.s32.totalorder %s45, %s46
      %p60 = scmp.eq.s32.totalorder %s24, 5
      %p61 = por %p59, %p60
      %p63 = scmp.ne.s32.totalorder %s46, %s62
      %p64 = scmp.eq.s32.totalorder %s24, 0
      %p65 = por %p63, %p64
      %s67 = sadd.s32 %s66, 1
      %p70 = scmp.eq.s32.totalorder %s18, 5
      %p71 = scmp.ne.s32.totalorder %s66, %s68
      %p72 = scmp.eq.s32.totalorder %s18, 0
      %p73 = por %p71, %p72
      %p74 = scmp.ne.s32.totalorder %s66, %s68
      %p75 = scmp.eq.s32.totalorder %s23, 5
      %p76 = por %p74, %p75
      %p77 = scmp.ne.s32.totalorder %s68, %s69
      %p78 = scmp.eq.s32.totalorder %s23, 0
      %p79 = por %p77, %p78
      %p80 = scmp.ne.s32.totalorder %s68, %s69
      %p81 = scmp.eq.s32.totalorder %s24, 5
      %p82 = por %p80, %p81
      %p84 = scmp.ne.s32.totalorder %s69, %s83
      %p85 = scmp.eq.s32.totalorder %s24, 0
      %p86 = por %p84, %p85
      %s88 = sadd.s32 %s87, 1
      %p91 = scmp.eq.s32.totalorder %s18, 5
      %p92 = scmp.ne.s32.totalorder %s87, %s89
      %p93 = scmp.eq.s32.totalorder %s18, 0
      %p94 = por %p92, %p93
      %p95 = scmp.ne.s32.totalorder %s87, %s89
      %p96 = scmp.eq.s32.totalorder %s23, 5
      %p97 = por %p95, %p96
      %p98 = scmp.ne.s32.totalorder %s89, %s90
      %p99 = scmp.eq.s32.totalorder %s23, 0
      %p100 = por %p98, %p99
      %p101 = scmp.ne.s32.totalorder %s89, %s90
      %p102 = scmp.eq.s32.totalorder %s24, 5
      %p103 = por %p101, %p102
      %p105 = scmp.ne.s32.totalorder %s90, %s104
      %p106 = scmp.eq.s32.totalorder %s24, 0
      %p107 = por %p105, %p106
      %s109 = sadd.s32 %s108, 1
      %p112 = scmp.eq.s32.totalorder %s18, 5
      %p113 = scmp.ne.s32.totalorder %s108, %s110
      %p114 = scmp.eq.s32.totalorder %s18, 0
      %p115 = por %p113, %p114
      %p116 = scmp.ne.s32.totalorder %s108, %s110
      %p117 = scmp.eq.s32.totalorder %s23, 5
      %p118 = por %p116, %p117
      %p119 = scmp.ne.s32.totalorder %s110, %s111
      %p120 = scmp.eq.s32.totalorder %s23, 0
      %p121 = por %p119, %p120
      %p122 = scmp.ne.s32.totalorder %s110, %s111
      %p123 = scmp.eq.s32.totalorder %s24, 5
      %p124 = por %p122, %p123
      %p126 = scmp.ne.s32.totalorder %s111, %s125
      %p127 = scmp.eq.s32.totalorder %s24, 0
      %p128 = por %p126, %p127
      %s130 = sadd.s32 %s129, 1
      %p133 = scmp.eq.s32.totalorder %s18, 5
      %p134 = scmp.ne.s32.totalorder %s129, %s131
      %p135 = scmp.eq.s32.totalorder %s18, 0
      %p136 = por %p134, %p135
      %p137 = scmp.ne.s32.totalorder %s129, %s131
      %p138 = scmp.eq.s32.totalorder %s23, 5
      %p139 = por %p137, %p138
      %p140 = scmp.ne.s32.totalorder %s131, %s132
      %p141 = scmp.eq.s32.totalorder %s23, 0
      %p142 = por %p140, %p141
      %p143 = scmp.ne.s32.totalorder %s131, %s132
      %p144 = scmp.eq.s32.totalorder %s24, 5
      %p145 = por %p143, %p144
      %p147 = scmp.ne.s32.totalorder %s132, %s146
      %p148 = scmp.eq.s32.totalorder %s24, 0
      %p149 = por %p147, %p148
      %s151 = sadd.s32 %s150, 1
      %p154 = scmp.eq.s32.totalorder %s18, 5
      %p155 = scmp.ne.s32.totalorder %s150, %s152
      %p156 = scmp.eq.s32.totalorder %s18, 0
      %p157 = por %p155, %p156
      %p158 = scmp.ne.s32.totalorder %s150, %s152
      %p159 = scmp.eq.s32.totalorder %s23, 5
      %p160 = por %p158, %p159
      %p161 = scmp.ne.s32.totalorder %s152, %s153
      %p162 = scmp.eq.s32.totalorder %s23, 0
      %p163 = por %p161, %p162
      %p164 = scmp.ne.s32.totalorder %s152, %s153
      %p165 = scmp.eq.s32.totalorder %s24, 5
      %p166 = por %p164, %p165
      %p168 = scmp.ne.s32.totalorder %s153, %s167
      %p169 = scmp.eq.s32.totalorder %s24, 0
      %p170 = por %p168, %p169
      %s172 = sadd.s32 %s171, 1
      %p175 = scmp.eq.s32.totalorder %s18, 5
      %p176 = scmp.ne.s32.totalorder %s171, %s173
      %p177 = scmp.eq.s32.totalorder %s18, 0
      %p178 = por %p176, %p177
      %p179 = scmp.ne.s32.totalorder %s171, %s173
      %p180 = scmp.eq.s32.totalorder %s23, 5
      %p181 = por %p179, %p180
      %p182 = scmp.ne.s32.totalorder %s173, %s174
      %p183 = scmp.eq.s32.totalorder %s23, 0
      %p184 = por %p182, %p183
      %p185 = scmp.ne.s32.totalorder %s173, %s174
      %p186 = scmp.eq.s32.totalorder %s24, 5
      %p187 = por %p185, %p186
      %p189 = scmp.ne.s32.totalorder %s174, %s188
      %p190 = scmp.eq.s32.totalorder %s24, 0
      %p191 = por %p189, %p190
      %s193 = sadd.s32 %s192, 1
      %p196 = scmp.eq.s32.totalorder %s18, 5
      %p197 = scmp.ne.s32.totalorder %s192, %s194
      %p198 = scmp.eq.s32.totalorder %s18, 0
      %p199 = por %p197, %p198
      %p200 = scmp.ne.s32.totalorder %s192, %s194
      %p201 = scmp.eq.s32.totalorder %s23, 5
      %p202 = por %p200, %p201
      %p203 = scmp.ne.s32.totalorder %s194, %s195
      %p204 = scmp.eq.s32.totalorder %s23, 0
      %p205 = por %p203, %p204
      %p206 = scmp.ne.s32.totalorder %s194, %s195
      %p207 = scmp.eq.s32.totalorder %s24, 5
      %p208 = por %p206, %p207
      %p210 = scmp.ne.s32.totalorder %s195, %s209
      %p211 = scmp.eq.s32.totalorder %s24, 0
      %p212 = por %p210, %p211
      %s214 = sadd.s32 %s213, 1
      %p217 = scmp.eq.s32.totalorder %s18, 5
      %p218 = scmp.ne.s32.totalorder %s213, %s215
      %p219 = scmp.eq.s32.totalorder %s18, 0
      %p220 = por %p218, %p219
      %p221 = scmp.ne.s32.totalorder %s213, %s215
      %p222 = scmp.eq.s32.totalorder %s23, 5
      %p223 = por %p221, %p222
      %p224 = scmp.ne.s32.totalorder %s215, %s216
      %p225 = scmp.eq.s32.totalorder %s23, 0
      %p226 = por %p224, %p225
      %p227 = scmp.ne.s32.totalorder %s215, %s216
      %p228 = scmp.eq.s32.totalorder %s24, 5
      %p229 = por %p227, %p228
      %p231 = scmp.ne.s32.totalorder %s216, %s230
      %p232 = scmp.eq.s32.totalorder %s24, 0
      %p233 = por %p231, %p232
      %s235 = sadd.s32 %s234, 1
      %p238 = scmp.eq.s32.totalorder %s18, 5
      %p239 = scmp.ne.s32.totalorder %s234, %s236
      %p240 = scmp.eq.s32.totalorder %s18, 0
      %p241 = por %p239, %p240
      %p242 = scmp.ne.s32.totalorder %s234, %s236
      %p243 = scmp.eq.s32.totalorder %s23, 5
      %p244 = por %p242, %p243
      %p245 = scmp.ne.s32.totalorder %s236, %s237
      %p246 = scmp.eq.s32.totalorder %s23, 0
      %p247 = por %p245, %p246
      %p248 = scmp.ne.s32.totalorder %s236, %s237
      %p249 = scmp.eq.s32.totalorder %s24, 5
      %p250 = por %p248, %p249
      %p252 = scmp.ne.s32.totalorder %s237, %s251
      %p253 = scmp.eq.s32.totalorder %s24, 0
      %p254 = por %p252, %p253
      %s256 = sadd.s32 %s255, 1
      %p259 = scmp.eq.s32.totalorder %s18, 5
      %p260 = scmp.ne.s32.totalorder %s255, %s257
      %p261 = scmp.eq.s32.totalorder %s18, 0
      %p262 = por %p260, %p261
      %p263 = scmp.ne.s32.totalorder %s255, %s257
      %p264 = scmp.eq.s32.totalorder %s23, 5
      %p265 = por %p263, %p264
      %p266 = scmp.ne.s32.totalorder %s257, %s258
      %p267 = scmp.eq.s32.totalorder %s23, 0
      %p268 = por %p266, %p267
      %p269 = scmp.ne.s32.totalorder %s257, %s258
      %p270 = scmp.eq.s32.totalorder %s24, 5
      %p271 = por %p269, %p270
      %p273 = scmp.ne.s32.totalorder %s258, %s272
      %p274 = scmp.eq.s32.totalorder %s24, 0
      %p275 = por %p273, %p274
      %s276 = ssub.s32 %s25, %s37
      %p277 = scmp.eq.s32.totalorder %s276, 0
      %s279 = sadd.s32 %s278, 1
      %s280 = scalar_select %p277, %s278, %s279
      %p283 = pneg %p277
      %p284 = scmp.eq.s32.totalorder %s18, 5
      %p285 = por %p283, %p284
      %p286 = scmp.ne.s32.totalorder %s278, %s281
      %p287 = scmp.eq.s32.totalorder %s18, 0
      %p288 = por %p286, %p287
      %p289 = scmp.ne.s32.totalorder %s278, %s281
      %p290 = scmp.eq.s32.totalorder %s23, 5
      %p291 = por %p289, %p290
      %p292 = scmp.ne.s32.totalorder %s281, %s282
      %p293 = scmp.eq.s32.totalorder %s23, 0
      %p294 = por %p292, %p293
      %p295 = scmp.ne.s32.totalorder %s281, %s282
      %p296 = scmp.eq.s32.totalorder %s24, 5
      %p297 = por %p295, %p296
      %p299 = scmp.ne.s32.totalorder %s282, %s298
      %p300 = scmp.eq.s32.totalorder %s24, 0
      %p301 = por %p299, %p300
      %p302 = scmp.le.s32.totalorder 1, %s18
      %p303 = scmp.lt.s32.totalorder %s18, 7
      %p304 = pnand %p302, %p303
      %p305 = pneg %p304
      // Predicated region
      $region9: #{tpu_custom_call.1} parent=5 // pred_check
        _
      $region10: #{tpu_custom_call.1} parent=5 // pred_check_branch
        %307 = sbr.rel (%p304) target = $region12
      $region11: #{tpu_custom_call.1} parent=5 // pred_region
        %s308 = ssub.s32 %s18, 1
        // Predicated region
        $region13: #{tpu_custom_call.1} parent=11 // pred_check
          %p309 = pneg %p79
        $region14: #{tpu_custom_call.1} parent=11 // pred_check_branch
          %311 = sbr.rel (%p309) target = $region16
        $region15: #{tpu_custom_call.1} parent=11 // pred_region
          _
        $region16: #{tpu_custom_call.1} parent=11 // pred_fallthru
          _
        // Predicated region
        $region17: #{tpu_custom_call.1} parent=11 // pred_check
          %p312 = pneg %p100
        $region18: #{tpu_custom_call.1} parent=11 // pred_check_branch
          %314 = sbr.rel (%p312) target = $region20
        $region19: #{tpu_custom_call.1} parent=11 // pred_region
          _
        $region20: #{tpu_custom_call.1} parent=11 // pred_fallthru
          _
        // Predicated region
        $region21: #{tpu_custom_call.1} parent=11 // pred_check
          %p315 = pneg %p121
        $region22: #{tpu_custom_call.1} parent=11 // pred_check_branch
          %317 = sbr.rel (%p315) target = $region24
        $region23: #{tpu_custom_call.1} parent=11 // pred_region
          _
        $region24: #{tpu_custom_call.1} parent=11 // pred_fallthru
          _
        // Predicated region
        $region25: #{tpu_custom_call.1} parent=11 // pred_check
          %p318 = pneg %p142
        $region26: #{tpu_custom_call.1} parent=11 // pred_check_branch
          %320 = sbr.rel (%p318) target = $region28
        $region27: #{tpu_custom_call.1} parent=11 // pred_region
          _
        $region28: #{tpu_custom_call.1} parent=11 // pred_fallthru
          _
        // Predicated region
        $region29: #{tpu_custom_call.1} parent=11 // pred_check
          %p321 = pneg %p163
        $region30: #{tpu_custom_call.1} parent=11 // pred_check_branch
          %323 = sbr.rel (%p321) target = $region32
        $region31: #{tpu_custom_call.1} parent=11 // pred_region
          %s325 = ssub.s32 16384, 16384
          %326 = vsyncadd [#allocation5], %s325
          %s327 = sshll.u32 [#allocation4], 4
          %s328 = int_to_ptr.vmem [resolvable:$true] %s327
          %333 = dma.hbm_to_vmem [thread:$0]  %s5, 16384, %s328, [#allocation5], 256, 256, 16
        $region32: #{tpu_custom_call.1} parent=11 // pred_fallthru
          _
        // Predicated region
        $region33: #{tpu_custom_call.1} parent=11 // pred_check
          %p334 = pneg %p184
        $region34: #{tpu_custom_call.1} parent=11 // pred_check_branch
          %336 = sbr.rel (%p334) target = $region36
        $region35: #{tpu_custom_call.1} parent=11 // pred_region
          _
        $region36: #{tpu_custom_call.1} parent=11 // pred_fallthru
          _
        // Predicated region
        $region37: #{tpu_custom_call.1} parent=11 // pred_check
          %p337 = pneg %p205
        $region38: #{tpu_custom_call.1} parent=11 // pred_check_branch
          %339 = sbr.rel (%p337) target = $region40
        $region39: #{tpu_custom_call.1} parent=11 // pred_region
          _
        $region40: #{tpu_custom_call.1} parent=11 // pred_fallthru
          _
        // Predicated region
        $region41: #{tpu_custom_call.1} parent=11 // pred_check
          %p340 = pneg %p226
        $region42: #{tpu_custom_call.1} parent=11 // pred_check_branch
          %342 = sbr.rel (%p340) target = $region44
        $region43: #{tpu_custom_call.1} parent=11 // pred_region
          _
        $region44: #{tpu_custom_call.1} parent=11 // pred_fallthru
          _
        // Predicated region
        $region45: #{tpu_custom_call.1} parent=11 // pred_check
          %p343 = pneg %p247
        $region46: #{tpu_custom_call.1} parent=11 // pred_check_branch
          %345 = sbr.rel (%p343) target = $region48
        $region47: #{tpu_custom_call.1} parent=11 // pred_region
          _
        $region48: #{tpu_custom_call.1} parent=11 // pred_fallthru
          _
        // Predicated region
        $region49: #{tpu_custom_call.1} parent=11 // pred_check
          %p346 = pneg %p268
        $region50: #{tpu_custom_call.1} parent=11 // pred_check_branch
          %348 = sbr.rel (%p346) target = $region52
        $region51: #{tpu_custom_call.1} parent=11 // pred_region
          _
        $region52: #{tpu_custom_call.1} parent=11 // pred_fallthru
          _
      $region12: #{tpu_custom_call.1} parent=5 // pred_fallthru
        _
      %p349 = scmp.lt.s32.totalorder %s18, 6
      // Predicated region
      $region53: #{tpu_custom_call.1} parent=5 // pred_check
        %p350 = pneg %p349
      $region54: #{tpu_custom_call.1} parent=5 // pred_check_branch
        %352 = sbr.rel (%p350) target = $region56
      $region55: #{tpu_custom_call.1} parent=5 // pred_region
        // Predicated region
        $region57: #{tpu_custom_call.1} parent=55 // pred_check
          %p353 = pneg %p52
        $region58: #{tpu_custom_call.1} parent=55 // pred_check_branch
          %355 = sbr.rel (%p353) target = $region60
        $region59: #{tpu_custom_call.1} parent=55 // pred_region
          %s356 = sand.u32 %s42, 1
          %s357 = sand.u32 %s42, 1
          %s358 = smul.addr %s357, 64
          %s359 = scalar_lea.vmem [#allocation3], %s358
          %s360 = smul.u32 8, %s25
          %s361 = smul.u32 2, %s26
          %s362 = smul.addr %s360, 6
          %s363 = sadd.s32 %s361, %s362
          %s364 = smul.addr %s363, 4
          %s365 = scalar_lea.vmem %s0, %s364
          // Predicated region
          $region61: #{tpu_custom_call.1} parent=59 // pred_check
            _
          $region62: #{tpu_custom_call.1} parent=59 // pred_check_branch
            %367 = sbr.rel (0) target = $region64
          $region63: #{tpu_custom_call.1} parent=59 // pred_region
            // Predicated region
            $region65: #{tpu_custom_call.1} parent=63 // pred_check
              _
            $region66: #{tpu_custom_call.1} parent=63 // pred_check_branch
              %369 = sbr.rel target = $region68
            $region67: #{tpu_custom_call.1} parent=63 // pred_region
              // Predicated region
              $region80: #{tpu_custom_call.1} parent=67 // pred_check
                _
              $region81: #{tpu_custom_call.1} parent=67 // pred_check_branch
                %414 = sbr.rel (0) target = $region83
              $region82: #{tpu_custom_call.1} parent=67 // pred_region
                loop: start=0, step=1, limit=1
                $region84: #{tpu_custom_call.1} parent=82 // loop_pre_header
                  _
                $region85: #{tpu_custom_call.1} parent=82 // loop_header
                  %s416 = sphi 0, %s420
                  %p417 = scmp.ge.s32.totalorder %s416, 1
                  %s421 = sphi %s365, %s365
                  %s422 = sphi %s359, %s359
                $region86: #{tpu_custom_call.1} parent=82 // loop_header_branch
                  %419 = sbr.rel (%p417) target = $region90
                $region87: #{tpu_custom_call.1} parent=82 // loop_body
                  _
                $region88: #{tpu_custom_call.1} parent=82 // loop_footer
                  %s420 = sadd.s32 1, %s416
                $region89: #{tpu_custom_call.1} parent=82 // loop_footer_branch
                  %415 = sbr.rel target = $region85
                $region90: #{tpu_custom_call.1} parent=82 // loop_exit
                  _
                loop: start=0, step=1, limit=1
                $region91: #{tpu_custom_call.1} parent=82 // loop_pre_header
                  _
                $region92: #{tpu_custom_call.1} parent=82 // loop_header
                  %s425 = sphi 0, %s429
                  %p426 = scmp.ge.s32.totalorder %s425, 1
                  %s430 = sphi %s365, %s365
                  %s431 = sphi %s359, %s359
                $region93: #{tpu_custom_call.1} parent=82 // loop_header_branch
                  %428 = sbr.rel (%p426) target = $region97
                $region94: #{tpu_custom_call.1} parent=82 // loop_body
                  %v432 = vld [vmem:[%s430] sm:$0xf]
                  %433 = vst [vmem:[%s431] sm:$0xf] %v432
                  %v434 = vld [vmem:[%s430 + $0x4] sm:$0xf]
                  %435 = vst [vmem:[%s431 + $0x4] sm:$0xf] %v434
                  %v436 = vld [vmem:[%s430 + $0x18] sm:$0xf]
                  %437 = vst [vmem:[%s431 + $0x8] sm:$0xf] %v436
                  %v438 = vld [vmem:[%s430 + $0x1c] sm:$0xf]
                  %439 = vst [vmem:[%s431 + $0xc] sm:$0xf] %v438
                  %v440 = vld [vmem:[%s430 + $0x30] sm:$0xf]
                  %441 = vst [vmem:[%s431 + $0x10] sm:$0xf] %v440
                  %v442 = vld [vmem:[%s430 + $0x34] sm:$0xf]
                  %443 = vst [vmem:[%s431 + $0x14] sm:$0xf] %v442
                  %v444 = vld [vmem:[%s430 + $0x48] sm:$0xf]
                  %445 = vst [vmem:[%s431 + $0x18] sm:$0xf] %v444
                  %v446 = vld [vmem:[%s430 + $0x4c] sm:$0xf]
                  %447 = vst [vmem:[%s431 + $0x1c] sm:$0xf] %v446
                  %v448 = vld [vmem:[%s430 + $0x60] sm:$0xf]
                  %449 = vst [vmem:[%s431 + $0x20] sm:$0xf] %v448
                  %v450 = vld [vmem:[%s430 + $0x64] sm:$0xf]
                  %451 = vst [vmem:[%s431 + $0x24] sm:$0xf] %v450
                  %v452 = vld [vmem:[%s430 + $0x78] sm:$0xf]
                  %453 = vst [vmem:[%s431 + $0x28] sm:$0xf] %v452
                  %v454 = vld [vmem:[%s430 + $0x7c] sm:$0xf]
                  %455 = vst [vmem:[%s431 + $0x2c] sm:$0xf] %v454
                  %v456 = vld [vmem:[%s430 + $0x90] sm:$0xf]
                  %457 = vst [vmem:[%s431 + $0x30] sm:$0xf] %v456
                  %v458 = vld [vmem:[%s430 + $0x94] sm:$0xf]
                  %459 = vst [vmem:[%s431 + $0x34] sm:$0xf] %v458
                  %v460 = vld [vmem:[%s430 + $0xa8] sm:$0xf]
                  %461 = vst [vmem:[%s431 + $0x38] sm:$0xf] %v460
                  %v462 = vld [vmem:[%s430 + $0xac] sm:$0xf]
                  %463 = vst [vmem:[%s431 + $0x3c] sm:$0xf] %v462
                $region95: #{tpu_custom_call.1} parent=82 // loop_footer
                  %s429 = sadd.s32 1, %s425
                $region96: #{tpu_custom_call.1} parent=82 // loop_footer_branch
                  %424 = sbr.rel target = $region92
                $region97: #{tpu_custom_call.1} parent=82 // loop_exit
                  _
              $region83: #{tpu_custom_call.1} parent=67 // pred_fallthru
                _
            $region68: #{tpu_custom_call.1} parent=63 // pred_fallthru
              _
            // Predicated region
            $region69: #{tpu_custom_call.1} parent=63 // pred_check
              _
            $region70: #{tpu_custom_call.1} parent=63 // pred_check_branch
              %371 = sbr.rel (0) target = $region72
            $region71: #{tpu_custom_call.1} parent=63 // pred_region
              loop: start=0, step=1, limit=1
              $region73: #{tpu_custom_call.1} parent=71 // loop_pre_header
                _
              $region74: #{tpu_custom_call.1} parent=71 // loop_header
                %s374 = sphi 0, %s378
                %p375 = scmp.ge.s32.totalorder %s374, 1
                %s379 = sphi %s365, %s365
                %s380 = sphi %s359, %s359
              $region75: #{tpu_custom_call.1} parent=71 // loop_header_branch
                %377 = sbr.rel (%p375) target = $region79
              $region76: #{tpu_custom_call.1} parent=71 // loop_body
                %v381 = vld [vmem:[%s379] sm:$0xf]
                %382 = vst [vmem:[%s380] sm:$0xf] %v381
                %v383 = vld [vmem:[%s379 + $0x4] sm:$0xf]
                %384 = vst [vmem:[%s380 + $0x4] sm:$0xf] %v383
                %v385 = vld [vmem:[%s379 + $0x18] sm:$0xf]
                %386 = vst [vmem:[%s380 + $0x8] sm:$0xf] %v385
                %v387 = vld [vmem:[%s379 + $0x1c] sm:$0xf]
                %388 = vst [vmem:[%s380 + $0xc] sm:$0xf] %v387
                %v389 = vld [vmem:[%s379 + $0x30] sm:$0xf]
                %390 = vst [vmem:[%s380 + $0x10] sm:$0xf] %v389
                %v391 = vld [vmem:[%s379 + $0x34] sm:$0xf]
                %392 = vst [vmem:[%s380 + $0x14] sm:$0xf] %v391
                %v393 = vld [vmem:[%s379 + $0x48] sm:$0xf]
                %394 = vst [vmem:[%s380 + $0x18] sm:$0xf] %v393
                %v395 = vld [vmem:[%s379 + $0x4c] sm:$0xf]
                %396 = vst [vmem:[%s380 + $0x1c] sm:$0xf] %v395
                %v397 = vld [vmem:[%s379 + $0x60] sm:$0xf]
                %398 = vst [vmem:[%s380 + $0x20] sm:$0xf] %v397
                %v399 = vld [vmem:[%s379 + $0x64] sm:$0xf]
                %400 = vst [vmem:[%s380 + $0x24] sm:$0xf] %v399
                %v401 = vld [vmem:[%s379 + $0x78] sm:$0xf]
                %402 = vst [vmem:[%s380 + $0x28] sm:$0xf] %v401
                %v403 = vld [vmem:[%s379 + $0x7c] sm:$0xf]
                %404 = vst [vmem:[%s380 + $0x2c] sm:$0xf] %v403
                %v405 = vld [vmem:[%s379 + $0x90] sm:$0xf]
                %406 = vst [vmem:[%s380 + $0x30] sm:$0xf] %v405
                %v407 = vld [vmem:[%s379 + $0x94] sm:$0xf]
                %408 = vst [vmem:[%s380 + $0x34] sm:$0xf] %v407
                %v409 = vld [vmem:[%s379 + $0xa8] sm:$0xf]
                %410 = vst [vmem:[%s380 + $0x38] sm:$0xf] %v409
                %v411 = vld [vmem:[%s379 + $0xac] sm:$0xf]
                %412 = vst [vmem:[%s380 + $0x3c] sm:$0xf] %v411
              $region77: #{tpu_custom_call.1} parent=71 // loop_footer
                %s378 = sadd.s32 1, %s374
              $region78: #{tpu_custom_call.1} parent=71 // loop_footer_branch
                %373 = sbr.rel target = $region74
              $region79: #{tpu_custom_call.1} parent=71 // loop_exit
                _
            $region72: #{tpu_custom_call.1} parent=63 // pred_fallthru
              _
          $region64: #{tpu_custom_call.1} parent=59 // pred_fallthru
            _
          %464 = vnop
        $region60: #{tpu_custom_call.1} parent=55 // pred_fallthru
          _
      $region56: #{tpu_custom_call.1} parent=5 // pred_fallthru
        _
      %p465 = scmp.le.s32.totalorder 1, %s18
      %p466 = scmp.lt.s32.totalorder %s18, 7
      %p467 = pnand %p465, %p466
      %p468 = pneg %p467
      // Predicated region
      $region98: #{tpu_custom_call.1} parent=5 // pred_check
        _
      $region99: #{tpu_custom_call.1} parent=5 // pred_check_branch
        %470 = sbr.rel (%p467) target = $region101
      $region100: #{tpu_custom_call.1} parent=5 // pred_region
        %s471 = ssub.s32 %s18, 1
        %s472 = sand.u32 %s45, 1
        %s473 = sand.u32 %s45, 1
        %s474 = smul.addr %s473, 64
        %s475 = scalar_lea.vmem [#allocation3], %s474
        // Predicated region
        $region102: #{tpu_custom_call.1} parent=100 // pred_check
          %p476 = pneg %p58
        $region103: #{tpu_custom_call.1} parent=100 // pred_check_branch
          %478 = sbr.rel (%p476) target = $region105
        $region104: #{tpu_custom_call.1} parent=100 // pred_region
          _
        $region105: #{tpu_custom_call.1} parent=100 // pred_fallthru
          _
        // Predicated region
        $region106: #{tpu_custom_call.1} parent=100 // pred_check
          %p479 = pneg %p163
        $region107: #{tpu_custom_call.1} parent=100 // pred_check_branch
          %481 = sbr.rel (%p479) target = $region109
        $region108: #{tpu_custom_call.1} parent=100 // pred_region
          %482 = dma.done [#allocation5], 16384
        $region109: #{tpu_custom_call.1} parent=100 // pred_fallthru
          _
        %s483 = sand.u32 %s45, 1
        %s484 = sand.u32 %s45, 1
        %s485 = smul.addr %s484, 64
        %s486 = scalar_lea.vmem [#allocation3], %s485
        %p487 = pneg %p58
        %p488 = pneg %p55
        %p489 = pneg %p79
        %p490 = pneg %p76
        %p491 = pneg %p100
        %p492 = pneg %p97
        %p493 = pneg %p121
        %p494 = pneg %p118
        %p495 = pneg %p142
        %p496 = pneg %p139
        %p497 = pneg %p163
        %p498 = pneg %p160
        %p499 = pneg %p184
        %p500 = pneg %p181
        %p501 = pneg %p205
        %p502 = pneg %p202
        %p503 = pneg %p226
        %p504 = pneg %p223
        %p505 = pneg %p247
        %p506 = pneg %p244
        %p507 = pneg %p268
        %p508 = pneg %p265
        %p509 = pneg %p294
        %p510 = pneg %p291
        %p511 = scmp.lt.s32.totalorder %s27, 1
        %s512 = scalar_select %p511, %s27, 1
        %s513 = smul.addr %s512, 8
        %s514 = scalar_lea.vmem %s11, %s513
        %s515 = smul.u32 8, %s27
        %s516 = smul.u32 2, %s28
        %p517 = scmp.lt.s32.totalorder %s27, 1
        %s518 = scalar_select %p517, %s27, 1
        %s519 = smul.addr %s518, 8
        %s520 = scalar_lea.vmem %s11, %s519
        %p521 = scmp.eq.s32.totalorder %s28, 0
        // Predicated region
        $region110: #{tpu_custom_call.1} parent=100 // pred_check
          %p522 = pneg %p521
        $region111: #{tpu_custom_call.1} parent=100 // pred_check_branch
          %524 = sbr.rel (%p522) target = $region113
        $region112: #{tpu_custom_call.1} parent=100 // pred_region
          %vm525 = vcmask 261120
          %526 = vst.msk [vmem:[#allocation2] sm:$0xff] %vm525, 0.0
        $region113: #{tpu_custom_call.1} parent=100 // pred_fallthru
          _
        %v527 = vld [vmem:[%s475] sm:$0xf]
        %v528 = vld [vmem:[%s475 + $0x4] sm:$0xf]
        %v529 = vld [vmem:[%s475 + $0x8] sm:$0xf]
        %v530 = vld [vmem:[%s475 + $0xc] sm:$0xf]
        %v531 = vld [vmem:[%s475 + $0x10] sm:$0xf]
        %v532 = vld [vmem:[%s475 + $0x14] sm:$0xf]
        %v533 = vld [vmem:[%s475 + $0x18] sm:$0xf]
        %v534 = vld [vmem:[%s475 + $0x1c] sm:$0xf]
        %v535 = vld [vmem:[%s475 + $0x20] sm:$0xf]
        %v536 = vld [vmem:[%s475 + $0x24] sm:$0xf]
        %v537 = vld [vmem:[%s475 + $0x28] sm:$0xf]
        %v538 = vld [vmem:[%s475 + $0x2c] sm:$0xf]
        %v539 = vld [vmem:[%s475 + $0x30] sm:$0xf]
        %v540 = vld [vmem:[%s475 + $0x34] sm:$0xf]
        %v541 = vld [vmem:[%s475 + $0x38] sm:$0xf]
        %v542 = vld [vmem:[%s475 + $0x3c] sm:$0xf]
        %v543 = vunpack.c.l.bf16 %v527
        %v544 = vunpack.c.l.bf16 %v528
        %v545 = vunpack.c.l.bf16 %v529
        %v546 = vunpack.c.l.bf16 %v530
        %v547 = vunpack.c.l.bf16 %v531
        %v548 = vunpack.c.l.bf16 %v532
        %v549 = vunpack.c.l.bf16 %v533
        %v550 = vunpack.c.l.bf16 %v534
        %v551 = vunpack.c.l.bf16 %v535
        %v552 = vunpack.c.l.bf16 %v536
        %v553 = vunpack.c.l.bf16 %v537
        %v554 = vunpack.c.l.bf16 %v538
        %v555 = vunpack.c.l.bf16 %v539
        %v556 = vunpack.c.l.bf16 %v540
        %v557 = vunpack.c.l.bf16 %v541
        %v558 = vunpack.c.l.bf16 %v542
        %v559 = vld [vmem:[#allocation2] sm:$0xff]
        %vm560 = vcmask 261120
        %v561 = vsel %vm560, %v543, 0.0
        %v562 = vsel %vm560, %v544, 0.0
        %v563 = vadd.f32 %v561, %v562
        %v564 = vrot.slane %v563, 4
        %v565 = vadd.f32 %v563, %v564
        %v566 = vrot.slane %v565, 2
        %v567 = vadd.f32 %v565, %v566
        %v568 = vrot.slane %v567, 1
        %v569 = vadd.f32 %v567, %v568
        %v570 = vsel %vm560, %v545, 0.0
        %v571 = vsel %vm560, %v546, 0.0
        %v572 = vadd.f32 %v570, %v571
        %v573 = vrot.slane %v572, 4
        %v574 = vadd.f32 %v572, %v573
        %v575 = vrot.slane %v574, 2
        %v576 = vadd.f32 %v574, %v575
        %v577 = vrot.slane %v576, 1
        %v578 = vadd.f32 %v576, %v577
        %v579 = vsel %vm560, %v547, 0.0
        %v580 = vsel %vm560, %v548, 0.0
        %v581 = vadd.f32 %v579, %v580
        %v582 = vrot.slane %v581, 4
        %v583 = vadd.f32 %v581, %v582
        %v584 = vrot.slane %v583, 2
        %v585 = vadd.f32 %v583, %v584
        %v586 = vrot.slane %v585, 1
        %v587 = vadd.f32 %v585, %v586
        %v588 = vsel %vm560, %v549, 0.0
        %v589 = vsel %vm560, %v550, 0.0
        %v590 = vadd.f32 %v588, %v589
        %v591 = vrot.slane %v590, 4
        %v592 = vadd.f32 %v590, %v591
        %v593 = vrot.slane %v592, 2
        %v594 = vadd.f32 %v592, %v593
        %v595 = vrot.slane %v594, 1
        %v596 = vadd.f32 %v594, %v595
        %v597 = vsel %vm560, %v551, 0.0
        %v598 = vsel %vm560, %v552, 0.0
        %v599 = vadd.f32 %v597, %v598
        %v600 = vrot.slane %v599, 4
        %v601 = vadd.f32 %v599, %v600
        %v602 = vrot.slane %v601, 2
        %v603 = vadd.f32 %v601, %v602
        %v604 = vrot.slane %v603, 1
        %v605 = vadd.f32 %v603, %v604
        %v606 = vsel %vm560, %v553, 0.0
        %v607 = vsel %vm560, %v554, 0.0
        %v608 = vadd.f32 %v606, %v607
        %v609 = vrot.slane %v608, 4
        %v610 = vadd.f32 %v608, %v609
        %v611 = vrot.slane %v610, 2
        %v612 = vadd.f32 %v610, %v611
        %v613 = vrot.slane %v612, 1
        %v614 = vadd.f32 %v612, %v613
        %v615 = vsel %vm560, %v555, 0.0
        %v616 = vsel %vm560, %v556, 0.0
        %v617 = vadd.f32 %v615, %v616
        %v618 = vrot.slane %v617, 4
        %v619 = vadd.f32 %v617, %v618
        %v620 = vrot.slane %v619, 2
        %v621 = vadd.f32 %v619, %v620
        %v622 = vrot.slane %v621, 1
        %v623 = vadd.f32 %v621, %v622
        %v624 = vsel %vm560, %v557, 0.0
        %v625 = vsel %vm560, %v558, 0.0
        %v626 = vadd.f32 %v624, %v625
        %v627 = vrot.slane %v626, 4
        %v628 = vadd.f32 %v626, %v627
        %v629 = vrot.slane %v628, 2
        %v630 = vadd.f32 %v628, %v629
        %v631 = vrot.slane %v630, 1
        %v632 = vadd.f32 %v630, %v631
        %vm641 = vcmask 1041409
        %v642 = vsel %vm641, %v578, %v569
        %vm643 = vcmask 1042434
        %v644 = vsel %vm643, %v587, %v642
        %vm645 = vcmask 1043459
        %v646 = vsel %vm645, %v596, %v644
        %vm647 = vcmask 1044484
        %v648 = vsel %vm647, %v605, %v646
        %vm649 = vcmask 1045509
        %v650 = vsel %vm649, %v614, %v648
        %vm651 = vcmask 1046534
        %v652 = vsel %vm651, %v623, %v650
        %vm653 = vcmask 1047559
        %v654 = vsel %vm653, %v632, %v652
        %v656 = vadd.f32 %v559, %v654
        %657 = vst.msk [vmem:[#allocation2] sm:$0xff] %vm560, %v656
        %p658 = scmp.eq.s32.totalorder %s28, 2
        // Predicated region
        $region114: #{tpu_custom_call.1} parent=100 // pred_check
          %p659 = pneg %p658
        $region115: #{tpu_custom_call.1} parent=100 // pred_check_branch
          %661 = sbr.rel (%p659) target = $region117
        $region116: #{tpu_custom_call.1} parent=100 // pred_region
          %v662 = vld [vmem:[#allocation2] sm:$0xff]
          %v663 = vmul.f32 %v662, 0.025
          %v664 = vld [vmem:[%s1] sm:$0xff]
          %v665 = vld [vmem:[%s1 + $0x8] sm:$0xff]
          %v666 = vld [vmem:[%s1 + $0x10] sm:$0xff]
          %v667 = vld [vmem:[%s1 + $0x18] sm:$0xff]
          %v668 = vld [vmem:[%s1 + $0x20] sm:$0xff]
          %v669 = vld [vmem:[%s1 + $0x28] sm:$0xff]
          %v670 = vld [vmem:[%s1 + $0x30] sm:$0xff]
          %v671 = vld [vmem:[%s1 + $0x38] sm:$0xff]
          %v672 = vld [vmem:[%s1 + $0x40] sm:$0xff]
          %v673 = vld [vmem:[%s1 + $0x48] sm:$0xff]
          %v674 = vld [vmem:[%s1 + $0x50] sm:$0xff]
          %v675 = vld [vmem:[%s1 + $0x58] sm:$0xff]
          %v676 = vld [vmem:[%s1 + $0x60] sm:$0xff]
          %v677 = vld [vmem:[%s1 + $0x68] sm:$0xff]
          %v678 = vld [vmem:[%s1 + $0x70] sm:$0xff]
          %v679 = vld [vmem:[%s1 + $0x78] sm:$0xff]
          %v680 = vld [vmem:[%s2] sm:$0xf]
          %v682 = vlaneseq
          %v683 = vshrl.u32 %v682, 7
          %v684 = vsub.s32 0, %v683
          %v685 = vrot.slane %v680, %v684
          %v686 = vlaneseq
          %v687 = vshrl.u32 %v686, 7
          %v688 = vsub.s32 1, %v687
          %v689 = vrot.slane %v680, %v688
          %v690 = vlaneseq
          %v691 = vshrl.u32 %v690, 7
          %v692 = vsub.s32 2, %v691
          %v693 = vrot.slane %v680, %v692
          %v694 = vlaneseq
          %v695 = vshrl.u32 %v694, 7
          %v696 = vsub.s32 3, %v695
          %v697 = vrot.slane %v680, %v696
          %v703 = vsel %vm560, %v663, 0
          %705 = vmatprep.subr.mxu0 %v665
          %706 = vmatpush1.msra.mxu0 %v664
          %707 = vmatprep.subr.mxu0 %v669
          %708 = vmatpush1.msra.mxu0 %v668
          %709 = vmatprep.subr.mxu0 %v673
          %710 = vmatpush1.msra.mxu0 %v672
          %711 = vmatprep.subr.mxu0 %v677
          %712 = vmatpush1.msra.mxu0 %v676
          %713 = vmatprep.subr.mxu0 0.0
          %714 = vmatpush1.msra.mxu0 0.0
          %715 = vmatprep.subr.mxu0 0.0
          %716 = vmatpush1.msra.mxu0 0.0
          %717 = vmatprep.subr.mxu0 0.0
          %718 = vmatpush1.msra.mxu0 0.0
          %719 = vmatprep.subr.mxu0 0.0
          %720 = vmatpush1.msra.mxu0 0.0
          %721 = vmatprep.subr.mxu0 0.0
          %722 = vmatpush1.msra.mxu0 0.0
          %723 = vmatprep.subr.mxu0 0.0
          %724 = vmatpush1.msra.mxu0 0.0
          %725 = vmatprep.subr.mxu0 0.0
          %726 = vmatpush1.msra.mxu0 0.0
          %727 = vmatprep.subr.mxu0 0.0
          %728 = vmatpush1.msra.mxu0 0.0
          %729 = vmatprep.subr.mxu0 0.0
          %730 = vmatpush1.msra.mxu0 0.0
          %731 = vmatprep.subr.mxu0 0.0
          %732 = vmatpush1.msra.mxu0 0.0
          %733 = vmatprep.subr.mxu0 0.0
          %734 = vmatpush1.msra.mxu0 0.0
          %735 = vmatprep.subr.mxu0 0.0
          %736 = vmatpush1.msra.mxu0 0.0
          %737 = vmatprep.subr.mxu0 0.0
          %738 = vmatpush1.msra.mxu0 0.0
          %739 = vmatprep.subr.mxu0 0.0
          %740 = vmatpush1.msra.mxu0 0.0
          %741 = vmatprep.subr.mxu0 0.0
          %742 = vmatpush1.msra.mxu0 0.0
          %743 = vmatprep.subr.mxu0 0.0
          %744 = vmatpush1.msra.mxu0 0.0
          %745 = vmatprep.subr.mxu0 0.0
          %746 = vmatpush1.msra.mxu0 0.0
          %747 = vmatprep.subr.mxu0 0.0
          %748 = vmatpush1.msra.mxu0 0.0
          %749 = vmatprep.subr.mxu0 0.0
          %750 = vmatpush1.msra.mxu0 0.0
          %751 = vmatprep.subr.mxu0 0.0
          %752 = vmatpush1.msra.mxu0 0.0
          %753 = vmatprep.subr.mxu0 0.0
          %754 = vmatpush1.msra.mxu0 0.0
          %755 = vmatprep.subr.mxu0 0.0
          %756 = vmatpush1.msra.mxu0 0.0
          %757 = vmatprep.subr.mxu0 0.0
          %758 = vmatpush1.msra.mxu0 0.0
          %759 = vmatprep.subr.mxu0 0.0
          %760 = vmatpush1.msra.mxu0 0.0
          %761 = vmatprep.subr.mxu0 0.0
          %762 = vmatpush1.msra.mxu0 0.0
          %763 = vmatprep.subr.mxu0 0.0
          %764 = vmatpush1.msra.mxu0 0.0
          %765 = vmatprep.subr.mxu0 0.0
          %766 = vmatpush1.msra.mxu0 0.0
          %767 = vmatprep.subr.mxu0 0.0
          %768 = vmatpush1.msra.mxu0 0.0
          %769 = vmatprep.mubr.f32.mxu0 0.0
          %770 = vmatmul.mubr.f32.gmra.mrb[0].mxu0 %v703
          %v771 = vpop.f32.mrb[0].mxu0
          %v772 = vadd.f32 %v685, %v771
          %v773 = vpop.f32.mrb[0].mxu0
          %v774 = vadd.f32 %v689, %v773
          %775 = vdwg.mxu0
          %776 = vmatprep.subr.mxu0 %v667
          %777 = vmatpush1.msra.mxu0 %v666
          %778 = vmatprep.subr.mxu0 %v671
          %779 = vmatpush1.msra.mxu0 %v670
          %780 = vmatprep.subr.mxu0 %v675
          %781 = vmatpush1.msra.mxu0 %v674
          %782 = vmatprep.subr.mxu0 %v679
          %783 = vmatpush1.msra.mxu0 %v678
          %784 = vmatprep.subr.mxu0 0.0
          %785 = vmatpush1.msra.mxu0 0.0
          %786 = vmatprep.subr.mxu0 0.0
          %787 = vmatpush1.msra.mxu0 0.0
          %788 = vmatprep.subr.mxu0 0.0
          %789 = vmatpush1.msra.mxu0 0.0
          %790 = vmatprep.subr.mxu0 0.0
          %791 = vmatpush1.msra.mxu0 0.0
          %792 = vmatprep.subr.mxu0 0.0
          %793 = vmatpush1.msra.mxu0 0.0
          %794 = vmatprep.subr.mxu0 0.0
          %795 = vmatpush1.msra.mxu0 0.0
          %796 = vmatprep.subr.mxu0 0.0
          %797 = vmatpush1.msra.mxu0 0.0
          %798 = vmatprep.subr.mxu0 0.0
          %799 = vmatpush1.msra.mxu0 0.0
          %800 = vmatprep.subr.mxu0 0.0
          %801 = vmatpush1.msra.mxu0 0.0
          %802 = vmatprep.subr.mxu0 0.0
          %803 = vmatpush1.msra.mxu0 0.0
          %804 = vmatprep.subr.mxu0 0.0
          %805 = vmatpush1.msra.mxu0 0.0
          %806 = vmatprep.subr.mxu0 0.0
          %807 = vmatpush1.msra.mxu0 0.0
          %808 = vmatprep.subr.mxu0 0.0
          %809 = vmatpush1.msra.mxu0 0.0
          %810 = vmatprep.subr.mxu0 0.0
          %811 = vmatpush1.msra.mxu0 0.0
          %812 = vmatprep.subr.mxu0 0.0
          %813 = vmatpush1.msra.mxu0 0.0
          %814 = vmatprep.subr.mxu0 0.0
          %815 = vmatpush1.msra.mxu0 0.0
          %816 = vmatprep.subr.mxu0 0.0
          %817 = vmatpush1.msra.mxu0 0.0
          %818 = vmatprep.subr.mxu0 0.0
          %819 = vmatpush1.msra.mxu0 0.0
          %820 = vmatprep.subr.mxu0 0.0
          %821 = vmatpush1.msra.mxu0 0.0
          %822 = vmatprep.subr.mxu0 0.0
          %823 = vmatpush1.msra.mxu0 0.0
          %824 = vmatprep.subr.mxu0 0.0
          %825 = vmatpush1.msra.mxu0 0.0
          %826 = vmatprep.subr.mxu0 0.0
          %827 = vmatpush1.msra.mxu0 0.0
          %828 = vmatprep.subr.mxu0 0.0
          %829 = vmatpush1.msra.mxu0 0.0
          %830 = vmatprep.subr.mxu0 0.0
          %831 = vmatpush1.msra.mxu0 0.0
          %832 = vmatprep.subr.mxu0 0.0
          %833 = vmatpush1.msra.mxu0 0.0
          %834 = vmatprep.subr.mxu0 0.0
          %835 = vmatpush1.msra.mxu0 0.0
          %836 = vmatprep.subr.mxu0 0.0
          %837 = vmatpush1.msra.mxu0 0.0
          %838 = vmatprep.subr.mxu0 0.0
          %839 = vmatpush1.msra.mxu0 0.0
          %840 = vmatprep.mubr.f32.mxu0 0.0
          %841 = vmatmul.mubr.f32.gmra.mrb[0].mxu0 %v703
          %v842 = vpop.f32.mrb[0].mxu0
          %v843 = vadd.f32 %v693, %v842
          %v844 = vpop.f32.mrb[0].mxu0
          %v845 = vadd.f32 %v697, %v844
          %846 = vdwg.mxu0
          %v847 = vmax.f32 %v772, 0.0
          %v848 = vmax.f32 %v774, 0.0
          %v849 = vmax.f32 %v843, 0.0
          %v850 = vmax.f32 %v845, 0.0
          %v851 = vld [vmem:[%s3] sm:$0xf]
          %v852 = vld [vmem:[%s4] sm:$0xf]
          %v853 = vadd.f32 %v847, %v848
          %v854 = vadd.f32 %v853, %v849
          %v855 = vadd.f32 %v854, %v850
          %856 = vadd.xlane.f32.xlu0 %v855
          %v857 = vpop.xlane.xlu0 %856
          %v858 = vrcp.pop 512.0
          %v859 = vmul.f32 %v857, %v858
          %v860 = vsub.f32 %v847, %v859
          %v861 = vsub.f32 %v848, %v859
          %v862 = vsub.f32 %v849, %v859
          %v863 = vsub.f32 %v850, %v859
          %v864 = vmul.f32 %v860, %v860
          %v865 = vmul.f32 %v861, %v861
          %v866 = vmul.f32 %v862, %v862
          %v867 = vmul.f32 %v863, %v863
          %v868 = vadd.f32 %v864, %v865
          %v869 = vadd.f32 %v868, %v866
          %v870 = vadd.f32 %v869, %v867
          %871 = vadd.xlane.f32.xlu0 %v870
          %v872 = vpop.xlane.xlu0 %871
          %v873 = vmul.f32 %v872, %v858
          %v874 = vadd.f32 %v873, 1e-05
          %v875 = vrsqrt.pop %v874
          %v876 = vmul.f32 %v860, %v875
          %v877 = vmul.f32 %v861, %v875
          %v878 = vmul.f32 %v862, %v875
          %v879 = vmul.f32 %v863, %v875
          %v881 = vlaneseq
          %v882 = vshrl.u32 %v881, 7
          %v883 = vsub.s32 0, %v882
          %v884 = vrot.slane %v851, %v883
          %v885 = vlaneseq
          %v886 = vshrl.u32 %v885, 7
          %v887 = vsub.s32 1, %v886
          %v888 = vrot.slane %v851, %v887
          %v889 = vlaneseq
          %v890 = vshrl.u32 %v889, 7
          %v891 = vsub.s32 2, %v890
          %v892 = vrot.slane %v851, %v891
          %v893 = vlaneseq
          %v894 = vshrl.u32 %v893, 7
          %v895 = vsub.s32 3, %v894
          %v896 = vrot.slane %v851, %v895
          %v901 = vmul.f32 %v876, %v884
          %v902 = vmul.f32 %v877, %v888
          %v903 = vmul.f32 %v878, %v892
          %v904 = vmul.f32 %v879, %v896
          %v906 = vlaneseq
          %v907 = vshrl.u32 %v906, 7
          %v908 = vsub.s32 0, %v907
          %v909 = vrot.slane %v852, %v908
          %v910 = vlaneseq
          %v911 = vshrl.u32 %v910, 7
          %v912 = vsub.s32 1, %v911
          %v913 = vrot.slane %v852, %v912
          %v914 = vlaneseq
          %v915 = vshrl.u32 %v914, 7
          %v916 = vsub.s32 2, %v915
          %v917 = vrot.slane %v852, %v916
          %v918 = vlaneseq
          %v919 = vshrl.u32 %v918, 7
          %v920 = vsub.s32 3, %v919
          %v921 = vrot.slane %v852, %v920
          %v926 = vadd.f32 %v901, %v909
          %v927 = vadd.f32 %v902, %v913
          %v928 = vadd.f32 %v903, %v917
          %v929 = vadd.f32 %v904, %v921
          %v930 = vld [vmem:[#allocation4] sm:$0xff]
          %v931 = vld [vmem:[#allocation4 + $0x8] sm:$0xff]
          %v932 = vld [vmem:[#allocation4 + $0x10] sm:$0xff]
          %v933 = vld [vmem:[#allocation4 + $0x18] sm:$0xff]
          %v934 = vld [vmem:[#allocation4 + $0x20] sm:$0xff]
          %v935 = vld [vmem:[#allocation4 + $0x28] sm:$0xff]
          %v936 = vld [vmem:[#allocation4 + $0x30] sm:$0xff]
          %v937 = vld [vmem:[#allocation4 + $0x38] sm:$0xff]
          %v938 = vld [vmem:[#allocation4 + $0x40] sm:$0xff]
          %v939 = vld [vmem:[#allocation4 + $0x48] sm:$0xff]
          %v940 = vld [vmem:[#allocation4 + $0x50] sm:$0xff]
          %v941 = vld [vmem:[#allocation4 + $0x58] sm:$0xff]
          %v942 = vld [vmem:[#allocation4 + $0x60] sm:$0xff]
          %v943 = vld [vmem:[#allocation4 + $0x68] sm:$0xff]
          %v944 = vld [vmem:[#allocation4 + $0x70] sm:$0xff]
          %v945 = vld [vmem:[#allocation4 + $0x78] sm:$0xff]
          %v946 = vld [vmem:[#allocation4 + $0x80] sm:$0xff]
          %v947 = vld [vmem:[#allocation4 + $0x88] sm:$0xff]
          %v948 = vld [vmem:[#allocation4 + $0x90] sm:$0xff]
          %v949 = vld [vmem:[#allocation4 + $0x98] sm:$0xff]
          %v950 = vld [vmem:[#allocation4 + $0xa0] sm:$0xff]
          %v951 = vld [vmem:[#allocation4 + $0xa8] sm:$0xff]
          %v952 = vld [vmem:[#allocation4 + $0xb0] sm:$0xff]
          %v953 = vld [vmem:[#allocation4 + $0xb8] sm:$0xff]
          %v954 = vld [vmem:[#allocation4 + $0xc0] sm:$0xff]
          %v955 = vld [vmem:[#allocation4 + $0xc8] sm:$0xff]
          %v956 = vld [vmem:[#allocation4 + $0xd0] sm:$0xff]
          %v957 = vld [vmem:[#allocation4 + $0xd8] sm:$0xff]
          %v958 = vld [vmem:[#allocation4 + $0xe0] sm:$0xff]
          %v959 = vld [vmem:[#allocation4 + $0xe8] sm:$0xff]
          %v960 = vld [vmem:[#allocation4 + $0xf0] sm:$0xff]
          %v961 = vld [vmem:[#allocation4 + $0xf8] sm:$0xff]
          %v962 = vld [vmem:[#allocation4 + $0x100] sm:$0xff]
          %v963 = vld [vmem:[#allocation4 + $0x108] sm:$0xff]
          %v964 = vld [vmem:[#allocation4 + $0x110] sm:$0xff]
          %v965 = vld [vmem:[#allocation4 + $0x118] sm:$0xff]
          %v966 = vld [vmem:[#allocation4 + $0x120] sm:$0xff]
          %v967 = vld [vmem:[#allocation4 + $0x128] sm:$0xff]
          %v968 = vld [vmem:[#allocation4 + $0x130] sm:$0xff]
          %v969 = vld [vmem:[#allocation4 + $0x138] sm:$0xff]
          %v970 = vld [vmem:[#allocation4 + $0x140] sm:$0xff]
          %v971 = vld [vmem:[#allocation4 + $0x148] sm:$0xff]
          %v972 = vld [vmem:[#allocation4 + $0x150] sm:$0xff]
          %v973 = vld [vmem:[#allocation4 + $0x158] sm:$0xff]
          %v974 = vld [vmem:[#allocation4 + $0x160] sm:$0xff]
          %v975 = vld [vmem:[#allocation4 + $0x168] sm:$0xff]
          %v976 = vld [vmem:[#allocation4 + $0x170] sm:$0xff]
          %v977 = vld [vmem:[#allocation4 + $0x178] sm:$0xff]
          %v978 = vld [vmem:[#allocation4 + $0x180] sm:$0xff]
          %v979 = vld [vmem:[#allocation4 + $0x188] sm:$0xff]
          %v980 = vld [vmem:[#allocation4 + $0x190] sm:$0xff]
          %v981 = vld [vmem:[#allocation4 + $0x198] sm:$0xff]
          %v982 = vld [vmem:[#allocation4 + $0x1a0] sm:$0xff]
          %v983 = vld [vmem:[#allocation4 + $0x1a8] sm:$0xff]
          %v984 = vld [vmem:[#allocation4 + $0x1b0] sm:$0xff]
          %v985 = vld [vmem:[#allocation4 + $0x1b8] sm:$0xff]
          %v986 = vld [vmem:[#allocation4 + $0x1c0] sm:$0xff]
          %v987 = vld [vmem:[#allocation4 + $0x1c8] sm:$0xff]
          %v988 = vld [vmem:[#allocation4 + $0x1d0] sm:$0xff]
          %v989 = vld [vmem:[#allocation4 + $0x1d8] sm:$0xff]
          %v990 = vld [vmem:[#allocation4 + $0x1e0] sm:$0xff]
          %v991 = vld [vmem:[#allocation4 + $0x1e8] sm:$0xff]
          %v992 = vld [vmem:[#allocation4 + $0x1f0] sm:$0xff]
          %v993 = vld [vmem:[#allocation4 + $0x1f8] sm:$0xff]
          %v994 = vld [vmem:[#allocation4 + $0x200] sm:$0xff]
          %v995 = vld [vmem:[#allocation4 + $0x208] sm:$0xff]
          %v996 = vld [vmem:[#allocation4 + $0x210] sm:$0xff]
          %v997 = vld [vmem:[#allocation4 + $0x218] sm:$0xff]
          %v998 = vld [vmem:[#allocation4 + $0x220] sm:$0xff]
          %v999 = vld [vmem:[#allocation4 + $0x228] sm:$0xff]
          %v1000 = vld [vmem:[#allocation4 + $0x230] sm:$0xff]
          %v1001 = vld [vmem:[#allocation4 + $0x238] sm:$0xff]
          %v1002 = vld [vmem:[#allocation4 + $0x240] sm:$0xff]
          %v1003 = vld [vmem:[#allocation4 + $0x248] sm:$0xff]
          %v1004 = vld [vmem:[#allocation4 + $0x250] sm:$0xff]
          %v1005 = vld [vmem:[#allocation4 + $0x258] sm:$0xff]
          %v1006 = vld [vmem:[#allocation4 + $0x260] sm:$0xff]
          %v1007 = vld [vmem:[#allocation4 + $0x268] sm:$0xff]
          %v1008 = vld [vmem:[#allocation4 + $0x270] sm:$0xff]
          %v1009 = vld [vmem:[#allocation4 + $0x278] sm:$0xff]
          %v1010 = vld [vmem:[#allocation4 + $0x280] sm:$0xff]
          %v1011 = vld [vmem:[#allocation4 + $0x288] sm:$0xff]
          %v1012 = vld [vmem:[#allocation4 + $0x290] sm:$0xff]
          %v1013 = vld [vmem:[#allocation4 + $0x298] sm:$0xff]
          %v1014 = vld [vmem:[#allocation4 + $0x2a0] sm:$0xff]
          %v1015 = vld [vmem:[#allocation4 + $0x2a8] sm:$0xff]
          %v1016 = vld [vmem:[#allocation4 + $0x2b0] sm:$0xff]
          %v1017 = vld [vmem:[#allocation4 + $0x2b8] sm:$0xff]
          %v1018 = vld [vmem:[#allocation4 + $0x2c0] sm:$0xff]
          %v1019 = vld [vmem:[#allocation4 + $0x2c8] sm:$0xff]
          %v1020 = vld [vmem:[#allocation4 + $0x2d0] sm:$0xff]
          %v1021 = vld [vmem:[#allocation4 + $0x2d8] sm:$0xff]
          %v1022 = vld [vmem:[#allocation4 + $0x2e0] sm:$0xff]
          %v1023 = vld [vmem:[#allocation4 + $0x2e8] sm:$0xff]
          %v1024 = vld [vmem:[#allocation4 + $0x2f0] sm:$0xff]
          %v1025 = vld [vmem:[#allocation4 + $0x2f8] sm:$0xff]
          %v1026 = vld [vmem:[#allocation4 + $0x300] sm:$0xff]
          %v1027 = vld [vmem:[#allocation4 + $0x308] sm:$0xff]
          %v1028 = vld [vmem:[#allocation4 + $0x310] sm:$0xff]
          %v1029 = vld [vmem:[#allocation4 + $0x318] sm:$0xff]
          %v1030 = vld [vmem:[#allocation4 + $0x320] sm:$0xff]
          %v1031 = vld [vmem:[#allocation4 + $0x328] sm:$0xff]
          %v1032 = vld [vmem:[#allocation4 + $0x330] sm:$0xff]
          %v1033 = vld [vmem:[#allocation4 + $0x338] sm:$0xff]
          %v1034 = vld [vmem:[#allocation4 + $0x340] sm:$0xff]
          %v1035 = vld [vmem:[#allocation4 + $0x348] sm:$0xff]
          %v1036 = vld [vmem:[#allocation4 + $0x350] sm:$0xff]
          %v1037 = vld [vmem:[#allocation4 + $0x358] sm:$0xff]
          %v1038 = vld [vmem:[#allocation4 + $0x360] sm:$0xff]
          %v1039 = vld [vmem:[#allocation4 + $0x368] sm:$0xff]
          %v1040 = vld [vmem:[#allocation4 + $0x370] sm:$0xff]
          %v1041 = vld [vmem:[#allocation4 + $0x378] sm:$0xff]
          %v1042 = vld [vmem:[#allocation4 + $0x380] sm:$0xff]
          %v1043 = vld [vmem:[#allocation4 + $0x388] sm:$0xff]
          %v1044 = vld [vmem:[#allocation4 + $0x390] sm:$0xff]
          %v1045 = vld [vmem:[#allocation4 + $0x398] sm:$0xff]
          %v1046 = vld [vmem:[#allocation4 + $0x3a0] sm:$0xff]
          %v1047 = vld [vmem:[#allocation4 + $0x3a8] sm:$0xff]
          %v1048 = vld [vmem:[#allocation4 + $0x3b0] sm:$0xff]
          %v1049 = vld [vmem:[#allocation4 + $0x3b8] sm:$0xff]
          %v1050 = vld [vmem:[#allocation4 + $0x3c0] sm:$0xff]
          %v1051 = vld [vmem:[#allocation4 + $0x3c8] sm:$0xff]
          %v1052 = vld [vmem:[#allocation4 + $0x3d0] sm:$0xff]
          %v1053 = vld [vmem:[#allocation4 + $0x3d8] sm:$0xff]
          %v1054 = vld [vmem:[#allocation4 + $0x3e0] sm:$0xff]
          %v1055 = vld [vmem:[#allocation4 + $0x3e8] sm:$0xff]
          %v1056 = vld [vmem:[#allocation4 + $0x3f0] sm:$0xff]
          %v1057 = vld [vmem:[#allocation4 + $0x3f8] sm:$0xff]
          %v1058 = vld [vmem:[%s6] sm:$0x3]
          %v1060 = vlaneseq
          %v1061 = vshrl.u32 %v1060, 7
          %v1062 = vsub.s32 0, %v1061
          %v1063 = vrot.slane %v1058, %v1062
          %v1064 = vlaneseq
          %v1065 = vshrl.u32 %v1064, 7
          %v1066 = vsub.s32 1, %v1065
          %v1067 = vrot.slane %v1058, %v1066
          %1070 = vmatprep.subr.mxu0 %v931
          %1071 = vmatpush1.msra.mxu0 %v930
          %1072 = vmatprep.subr.mxu0 %v933
          %1073 = vmatpush1.msra.mxu0 %v932
          %1074 = vmatprep.subr.mxu0 %v935
          %1075 = vmatpush1.msra.mxu0 %v934
          %1076 = vmatprep.subr.mxu0 %v937
          %1077 = vmatpush1.msra.mxu0 %v936
          %1078 = vmatprep.subr.mxu0 %v939
          %1079 = vmatpush1.msra.mxu0 %v938
          %1080 = vmatprep.subr.mxu0 %v941
          %1081 = vmatpush1.msra.mxu0 %v940
          %1082 = vmatprep.subr.mxu0 %v943
          %1083 = vmatpush1.msra.mxu0 %v942
          %1084 = vmatprep.subr.mxu0 %v945
          %1085 = vmatpush1.msra.mxu0 %v944
          %1086 = vmatprep.subr.mxu0 %v947
          %1087 = vmatpush1.msra.mxu0 %v946
          %1088 = vmatprep.subr.mxu0 %v949
          %1089 = vmatpush1.msra.mxu0 %v948
          %1090 = vmatprep.subr.mxu0 %v951
          %1091 = vmatpush1.msra.mxu0 %v950
          %1092 = vmatprep.subr.mxu0 %v953
          %1093 = vmatpush1.msra.mxu0 %v952
          %1094 = vmatprep.subr.mxu0 %v955
          %1095 = vmatpush1.msra.mxu0 %v954
          %1096 = vmatprep.subr.mxu0 %v957
          %1097 = vmatpush1.msra.mxu0 %v956
          %1098 = vmatprep.subr.mxu0 %v959
          %1099 = vmatpush1.msra.mxu0 %v958
          %1100 = vmatprep.subr.mxu0 %v961
          %1101 = vmatpush1.msra.mxu0 %v960
          %1102 = vmatprep.subr.mxu0 %v963
          %1103 = vmatpush1.msra.mxu0 %v962
          %1104 = vmatprep.subr.mxu0 %v965
          %1105 = vmatpush1.msra.mxu0 %v964
          %1106 = vmatprep.subr.mxu0 %v967
          %1107 = vmatpush1.msra.mxu0 %v966
          %1108 = vmatprep.subr.mxu0 %v969
          %1109 = vmatpush1.msra.mxu0 %v968
          %1110 = vmatprep.subr.mxu0 %v971
          %1111 = vmatpush1.msra.mxu0 %v970
          %1112 = vmatprep.subr.mxu0 %v973
          %1113 = vmatpush1.msra.mxu0 %v972
          %1114 = vmatprep.subr.mxu0 %v975
          %1115 = vmatpush1.msra.mxu0 %v974
          %1116 = vmatprep.subr.mxu0 %v977
          %1117 = vmatpush1.msra.mxu0 %v976
          %1118 = vmatprep.subr.mxu0 %v979
          %1119 = vmatpush1.msra.mxu0 %v978
          %1120 = vmatprep.subr.mxu0 %v981
          %1121 = vmatpush1.msra.mxu0 %v980
          %1122 = vmatprep.subr.mxu0 %v983
          %1123 = vmatpush1.msra.mxu0 %v982
          %1124 = vmatprep.subr.mxu0 %v985
          %1125 = vmatpush1.msra.mxu0 %v984
          %1126 = vmatprep.subr.mxu0 %v987
          %1127 = vmatpush1.msra.mxu0 %v986
          %1128 = vmatprep.subr.mxu0 %v989
          %1129 = vmatpush1.msra.mxu0 %v988
          %1130 = vmatprep.subr.mxu0 %v991
          %1131 = vmatpush1.msra.mxu0 %v990
          %1132 = vmatprep.subr.mxu0 %v993
          %1133 = vmatpush1.msra.mxu0 %v992
          %1134 = vmatprep.mubr.f32.mxu0 %v927
          %1135 = vmatmul.mubr.f32.gmra.mrb[0].mxu0 %v926
          %v1136 = vpop.f32.mrb[0].mxu0
          %v1137 = vadd.f32 %v1063, %v1136
          %v1138 = vpop.f32.mrb[0].mxu0
          %v1139 = vadd.f32 %v1067, %v1138
          %1140 = vdwg.mxu0
          %1141 = vmatprep.subr.mxu0 %v995
          %1142 = vmatpush1.msra.mxu0 %v994
          %1143 = vmatprep.subr.mxu0 %v997
          %1144 = vmatpush1.msra.mxu0 %v996
          %1145 = vmatprep.subr.mxu0 %v999
          %1146 = vmatpush1.msra.mxu0 %v998
          %1147 = vmatprep.subr.mxu0 %v1001
          %1148 = vmatpush1.msra.mxu0 %v1000
          %1149 = vmatprep.subr.mxu0 %v1003
          %1150 = vmatpush1.msra.mxu0 %v1002
          %1151 = vmatprep.subr.mxu0 %v1005
          %1152 = vmatpush1.msra.mxu0 %v1004
          %1153 = vmatprep.subr.mxu0 %v1007
          %1154 = vmatpush1.msra.mxu0 %v1006
          %1155 = vmatprep.subr.mxu0 %v1009
          %1156 = vmatpush1.msra.mxu0 %v1008
          %1157 = vmatprep.subr.mxu0 %v1011
          %1158 = vmatpush1.msra.mxu0 %v1010
          %1159 = vmatprep.subr.mxu0 %v1013
          %1160 = vmatpush1.msra.mxu0 %v1012
          %1161 = vmatprep.subr.mxu0 %v1015
          %1162 = vmatpush1.msra.mxu0 %v1014
          %1163 = vmatprep.subr.mxu0 %v1017
          %1164 = vmatpush1.msra.mxu0 %v1016
          %1165 = vmatprep.subr.mxu0 %v1019
          %1166 = vmatpush1.msra.mxu0 %v1018
          %1167 = vmatprep.subr.mxu0 %v1021
          %1168 = vmatpush1.msra.mxu0 %v1020
          %1169 = vmatprep.subr.mxu0 %v1023
          %1170 = vmatpush1.msra.mxu0 %v1022
          %1171 = vmatprep.subr.mxu0 %v1025
          %1172 = vmatpush1.msra.mxu0 %v1024
          %1173 = vmatprep.subr.mxu0 %v1027
          %1174 = vmatpush1.msra.mxu0 %v1026
          %1175 = vmatprep.subr.mxu0 %v1029
          %1176 = vmatpush1.msra.mxu0 %v1028
          %1177 = vmatprep.subr.mxu0 %v1031
          %1178 = vmatpush1.msra.mxu0 %v1030
          %1179 = vmatprep.subr.mxu0 %v1033
          %1180 = vmatpush1.msra.mxu0 %v1032
          %1181 = vmatprep.subr.mxu0 %v1035
          %1182 = vmatpush1.msra.mxu0 %v1034
          %1183 = vmatprep.subr.mxu0 %v1037
          %1184 = vmatpush1.msra.mxu0 %v1036
          %1185 = vmatprep.subr.mxu0 %v1039
          %1186 = vmatpush1.msra.mxu0 %v1038
          %1187 = vmatprep.subr.mxu0 %v1041
          %1188 = vmatpush1.msra.mxu0 %v1040
          %1189 = vmatprep.subr.mxu0 %v1043
          %1190 = vmatpush1.msra.mxu0 %v1042
          %1191 = vmatprep.subr.mxu0 %v1045
          %1192 = vmatpush1.msra.mxu0 %v1044
          %1193 = vmatprep.subr.mxu0 %v1047
          %1194 = vmatpush1.msra.mxu0 %v1046
          %1195 = vmatprep.subr.mxu0 %v1049
          %1196 = vmatpush1.msra.mxu0 %v1048
          %1197 = vmatprep.subr.mxu0 %v1051
          %1198 = vmatpush1.msra.mxu0 %v1050
          %1199 = vmatprep.subr.mxu0 %v1053
          %1200 = vmatpush1.msra.mxu0 %v1052
          %1201 = vmatprep.subr.mxu0 %v1055
          %1202 = vmatpush1.msra.mxu0 %v1054
          %1203 = vmatprep.subr.mxu0 %v1057
          %1204 = vmatpush1.msra.mxu0 %v1056
          %1205 = vmatprep.mubr.f32.mxu0 %v929
          %1206 = vmatmul.mubr.f32.gmra.mrb[0].mxu0 %v928
          %v1207 = vpop.f32.mrb[0].mxu0
          %v1208 = vadd.f32 %v1137, %v1207
          %v1209 = vpop.f32.mrb[0].mxu0
          %v1210 = vadd.f32 %v1139, %v1209
          %1211 = vdwg.mxu0
          %v1212 = vmax.f32 %v1208, 0.0
          %v1213 = vmax.f32 %v1210, 0.0
          %v1214 = vld [vmem:[%s7] sm:$0x3]
          %v1215 = vld [vmem:[%s8] sm:$0x3]
          %v1216 = vadd.f32 %v1212, %v1213
          %1217 = vadd.xlane.f32.xlu0 %v1216
          %v1218 = vpop.xlane.xlu0 %1217
          %v1219 = vrcp.pop 256.0
          %v1220 = vmul.f32 %v1218, %v1219
          %v1221 = vsub.f32 %v1212, %v1220
          %v1222 = vsub.f32 %v1213, %v1220
          %v1223 = vmul.f32 %v1221, %v1221
          %v1224 = vmul.f32 %v1222, %v1222
          %v1225 = vadd.f32 %v1223, %v1224
          %1226 = vadd.xlane.f32.xlu0 %v1225
          %v1227 = vpop.xlane.xlu0 %1226
          %v1228 = vmul.f32 %v1227, %v1219
          %v1229 = vadd.f32 %v1228, 1e-05
          %v1230 = vrsqrt.pop %v1229
          %v1231 = vmul.f32 %v1221, %v1230
          %v1232 = vmul.f32 %v1222, %v1230
          %v1234 = vlaneseq
          %v1235 = vshrl.u32 %v1234, 7
          %v1236 = vsub.s32 0, %v1235
          %v1237 = vrot.slane %v1214, %v1236
          %v1238 = vlaneseq
          %v1239 = vshrl.u32 %v1238, 7
          %v1240 = vsub.s32 1, %v1239
          %v1241 = vrot.slane %v1214, %v1240
          %v1244 = vmul.f32 %v1231, %v1237
          %v1245 = vmul.f32 %v1232, %v1241
          %v1247 = vlaneseq
          %v1248 = vshrl.u32 %v1247, 7
          %v1249 = vsub.s32 0, %v1248
          %v1250 = vrot.slane %v1215, %v1249
          %v1251 = vlaneseq
          %v1252 = vshrl.u32 %v1251, 7
          %v1253 = vsub.s32 1, %v1252
          %v1254 = vrot.slane %v1215, %v1253
          %v1257 = vadd.f32 %v1244, %v1250
          %v1258 = vadd.f32 %v1245, %v1254
          %v1259 = vld [vmem:[%s9] sm:$0xff]
          %v1260 = vld [vmem:[%s9 + $0x8] sm:$0xff]
          %v1261 = vld [vmem:[%s9 + $0x10] sm:$0xff]
          %v1262 = vld [vmem:[%s9 + $0x18] sm:$0xff]
          %v1263 = vld [vmem:[%s9 + $0x20] sm:$0xff]
          %v1264 = vld [vmem:[%s9 + $0x28] sm:$0xff]
          %v1265 = vld [vmem:[%s9 + $0x30] sm:$0xff]
          %v1266 = vld [vmem:[%s9 + $0x38] sm:$0xff]
          %v1267 = vld [vmem:[%s9 + $0x40] sm:$0xff]
          %v1268 = vld [vmem:[%s9 + $0x48] sm:$0xff]
          %v1269 = vld [vmem:[%s9 + $0x50] sm:$0xff]
          %v1270 = vld [vmem:[%s9 + $0x58] sm:$0xff]
          %v1271 = vld [vmem:[%s9 + $0x60] sm:$0xff]
          %v1272 = vld [vmem:[%s9 + $0x68] sm:$0xff]
          %v1273 = vld [vmem:[%s9 + $0x70] sm:$0xff]
          %v1274 = vld [vmem:[%s9 + $0x78] sm:$0xff]
          %v1275 = vld [vmem:[%s9 + $0x80] sm:$0xff]
          %v1276 = vld [vmem:[%s9 + $0x88] sm:$0xff]
          %v1277 = vld [vmem:[%s9 + $0x90] sm:$0xff]
          %v1278 = vld [vmem:[%s9 + $0x98] sm:$0xff]
          %v1279 = vld [vmem:[%s9 + $0xa0] sm:$0xff]
          %v1280 = vld [vmem:[%s9 + $0xa8] sm:$0xff]
          %v1281 = vld [vmem:[%s9 + $0xb0] sm:$0xff]
          %v1282 = vld [vmem:[%s9 + $0xb8] sm:$0xff]
          %v1283 = vld [vmem:[%s9 + $0xc0] sm:$0xff]
          %v1284 = vld [vmem:[%s9 + $0xc8] sm:$0xff]
          %v1285 = vld [vmem:[%s9 + $0xd0] sm:$0xff]
          %v1286 = vld [vmem:[%s9 + $0xd8] sm:$0xff]
          %v1287 = vld [vmem:[%s9 + $0xe0] sm:$0xff]
          %v1288 = vld [vmem:[%s9 + $0xe8] sm:$0xff]
          %v1289 = vld [vmem:[%s9 + $0xf0] sm:$0xff]
          %v1290 = vld [vmem:[%s9 + $0xf8] sm:$0xff]
          %v1291 = vld [vmem:[%s10] sm:$0x1]
          %v1293 = vlaneseq
          %v1294 = vshrl.u32 %v1293, 7
          %v1295 = vsub.s32 0, %v1294
          %v1296 = vrot.slane %v1291, %v1295
          %1298 = vmatprep.subr.mxu0 0.0
          %1299 = vmatpush1.msra.mxu0 %v1259
          %1300 = vmatprep.subr.mxu0 0.0
          %1301 = vmatpush1.msra.mxu0 %v1260
          %1302 = vmatprep.subr.mxu0 0.0
          %1303 = vmatpush1.msra.mxu0 %v1261
          %1304 = vmatprep.subr.mxu0 0.0
          %1305 = vmatpush1.msra.mxu0 %v1262
          %1306 = vmatprep.subr.mxu0 0.0
          %1307 = vmatpush1.msra.mxu0 %v1263
          %1308 = vmatprep.subr.mxu0 0.0
          %1309 = vmatpush1.msra.mxu0 %v1264
          %1310 = vmatprep.subr.mxu0 0.0
          %1311 = vmatpush1.msra.mxu0 %v1265
          %1312 = vmatprep.subr.mxu0 0.0
          %1313 = vmatpush1.msra.mxu0 %v1266
          %1314 = vmatprep.subr.mxu0 0.0
          %1315 = vmatpush1.msra.mxu0 %v1267
          %1316 = vmatprep.subr.mxu0 0.0
          %1317 = vmatpush1.msra.mxu0 %v1268
          %1318 = vmatprep.subr.mxu0 0.0
          %1319 = vmatpush1.msra.mxu0 %v1269
          %1320 = vmatprep.subr.mxu0 0.0
          %1321 = vmatpush1.msra.mxu0 %v1270
          %1322 = vmatprep.subr.mxu0 0.0
          %1323 = vmatpush1.msra.mxu0 %v1271
          %1324 = vmatprep.subr.mxu0 0.0
          %1325 = vmatpush1.msra.mxu0 %v1272
          %1326 = vmatprep.subr.mxu0 0.0
          %1327 = vmatpush1.msra.mxu0 %v1273
          %1328 = vmatprep.subr.mxu0 0.0
          %1329 = vmatpush1.msra.mxu0 %v1274
          %1330 = vmatprep.subr.mxu0 0.0
          %1331 = vmatpush1.msra.mxu0 %v1275
          %1332 = vmatprep.subr.mxu0 0.0
          %1333 = vmatpush1.msra.mxu0 %v1276
          %1334 = vmatprep.subr.mxu0 0.0
          %1335 = vmatpush1.msra.mxu0 %v1277
          %1336 = vmatprep.subr.mxu0 0.0
          %1337 = vmatpush1.msra.mxu0 %v1278
          %1338 = vmatprep.subr.mxu0 0.0
          %1339 = vmatpush1.msra.mxu0 %v1279
          %1340 = vmatprep.subr.mxu0 0.0
          %1341 = vmatpush1.msra.mxu0 %v1280
          %1342 = vmatprep.subr.mxu0 0.0
          %1343 = vmatpush1.msra.mxu0 %v1281
          %1344 = vmatprep.subr.mxu0 0.0
          %1345 = vmatpush1.msra.mxu0 %v1282
          %1346 = vmatprep.subr.mxu0 0.0
          %1347 = vmatpush1.msra.mxu0 %v1283
          %1348 = vmatprep.subr.mxu0 0.0
          %1349 = vmatpush1.msra.mxu0 %v1284
          %1350 = vmatprep.subr.mxu0 0.0
          %1351 = vmatpush1.msra.mxu0 %v1285
          %1352 = vmatprep.subr.mxu0 0.0
          %1353 = vmatpush1.msra.mxu0 %v1286
          %1354 = vmatprep.subr.mxu0 0.0
          %1355 = vmatpush1.msra.mxu0 %v1287
          %1356 = vmatprep.subr.mxu0 0.0
          %1357 = vmatpush1.msra.mxu0 %v1288
          %1358 = vmatprep.subr.mxu0 0.0
          %1359 = vmatpush1.msra.mxu0 %v1289
          %1360 = vmatprep.subr.mxu0 0.0
          %1361 = vmatpush1.msra.mxu0 %v1290
          %1362 = vmatprep.mubr.f32.mxu0 %v1258
          %1363 = vmatmul.mubr.f32.gmra.mrb[0].mxu0 %v1257
          %v1364 = vpop.f32.mrb[0].mxu0
          %v1365 = vadd.f32 %v1296, %v1364
          %v1366 = vpop.f32.mrb[0].mxu0
          %1367 = vdwg.mxu0
          %vm1368 = vcmask 56320
          %1369 = vst.msk [vmem:[%s520] sm:$0xff] %vm1368, %v1365
        $region117: #{tpu_custom_call.1} parent=100 // pred_fallthru
          _
        %p1370 = scmp.lt.s32.totalorder %s27, 1
        %s1371 = scalar_select %p1370, %s27, 1
        %s1372 = smul.addr %s1371, 8
        %s1373 = scalar_lea.vmem %s11, %s1372
        // Predicated region
        $region118: #{tpu_custom_call.1} parent=100 // pred_check
          %p1374 = pneg %p291
        $region119: #{tpu_custom_call.1} parent=100 // pred_check_branch
          %1376 = sbr.rel (%p1374) target = $region121
        $region120: #{tpu_custom_call.1} parent=100 // pred_region
          _
        $region121: #{tpu_custom_call.1} parent=100 // pred_fallthru
          _
      $region101: #{tpu_custom_call.1} parent=5 // pred_fallthru
        _
      %p1377 = scmp.le.s32.totalorder 2, %s18
      // Predicated region
      $region122: #{tpu_custom_call.1} parent=5 // pred_check
        %p1378 = pneg %p1377
      $region123: #{tpu_custom_call.1} parent=5 // pred_check_branch
        %1380 = sbr.rel (%p1378) target = $region125
      $region124: #{tpu_custom_call.1} parent=5 // pred_region
        %s1381 = ssub.s32 %s18, 2
        // Predicated region
        $region126: #{tpu_custom_call.1} parent=124 // pred_check
          %p1382 = pneg %p297
        $region127: #{tpu_custom_call.1} parent=124 // pred_check_branch
          %1384 = sbr.rel (%p1382) target = $region129
        $region128: #{tpu_custom_call.1} parent=124 // pred_region
          %p1385 = scmp.lt.s32.totalorder %s29, 1
          %s1386 = scalar_select %p1385, %s29, 1
          %s1387 = smul.addr %s1386, 8
          %s1388 = scalar_lea.vmem %s11, %s1387
        $region129: #{tpu_custom_call.1} parent=124 // pred_fallthru
          _
      $region125: #{tpu_custom_call.1} parent=5 // pred_fallthru
        _
    $region6: #{tpu_custom_call.1} parent=1 // loop_footer
      %s22 = sadd.s32 1, %s18
    $region7: #{tpu_custom_call.1} parent=1 // loop_footer_branch
      %17 = sbr.rel target = $region3
    $region8: #{tpu_custom_call.1} parent=1 // loop_exit
      _
    %1389 = vsyncpa [#allocation5], 1
    %s1390 = scalar_lea.sflag [#allocation5], 1
    %1391 = vsyncpa %s1390, 1

</llo_original>
